<compile_context>
chip_gen: v6e
topology: v6e:2x2x1
jax: 0.10.0
libtpu: 0.0.40
codegen_flags: <defaults>
</compile_context>

<pallas_src>
import jax
import jax.numpy as jnp
from jax.experimental import pallas as pl
from jax.experimental.pallas import tpu as pltpu


def _round_up(x, m):
    return ((x + m - 1) // m) * m


def _pad_to(x, target_shape):
    """Zero-pad `x` up to target_shape; no-op (no extra HBM copy) when aligned."""
    if tuple(x.shape) == tuple(target_shape):
        return x
    return jnp.pad(x, [(0, t - s) for s, t in zip(x.shape, target_shape)])


def _vmem_capacity_bytes():
    try:
        return int(pltpu.get_tpu_info().vmem_capacity_bytes)
    except Exception:
        return 64 * 1024 * 1024  # conservative fallback (v7x per-core VMEM)


def _pick_tile_v(Hp, V):
    """Generation-aware lane-dense vocab tile width for the streamed fc weights.

    Spend ~40% of VMEM on the double-buffered (Hp, tile_v) bf16 weight tiles
    (+ logits/bias tiles); clamp to [512, 4096] and never exceed the padded
    vocab (small V -> whole w_fc^T resident, single grid step).
    """
    budget = int(_vmem_capacity_bytes() * 0.4)
    per_col = 2 * (Hp * 2 + 8 * 4 + 4)  # 2 buffers x (bf16 weight col + logits col + bias)
    tv = (budget // max(per_col, 1)) // 128 * 128
    tv = max(512, min(tv, 4096))
    return min(tv, _round_up(V, 128))


# --------------------------------------------------------------------------- #
# Kernels
# --------------------------------------------------------------------------- #
def attn_lstm_kernel(emb_ref, h0_ref, c0_ref, enc_ref, w_xh_ref, b_ref,
                     h1_ref, c1_ref):
    """Dot-product attention + single LSTM step (single grid point, all VMEM-resident)."""
    f32, bf16 = jnp.float32, jnp.bfloat16
    emb = emb_ref[...]                          # (Bp, Hp)  f32
    h0 = h0_ref[...]                            # (Bp, Hp)  f32
    c0 = c0_ref[...]                            # (Bp, Hp)  f32
    enc = enc_ref[...]                          # (Bp, S, Hp) bf16

    # ---- attention: MXU batched einsums (bf16 operands, f32 accumulation) ----
    q = h0[:, None, :].astype(bf16)                                   # (Bp, 1, Hp)
    scores = jnp.einsum("bqh,bsh->bqs", q, enc,
                        preferred_element_type=f32)                   # (Bp, 1, S)
    m = jnp.max(scores, axis=-1, keepdims=True)
    e = jnp.exp(scores - m)
    attn = e * pl.reciprocal(jnp.sum(e, axis=-1, keepdims=True), approx=True)
    context = jnp.einsum("bqs,bsh->bqh", attn.astype(bf16), enc,
                         preferred_element_type=f32)[:, 0, :]         # (Bp, Hp)

    # ---- LSTM step with fused gate matmul: [x ; h0] @ [W_ih ; W_hh] + (b_ih+b_hh) ----
    x = emb + context
    xh = jnp.concatenate([x.astype(bf16), h0.astype(bf16)], axis=1)   # (Bp, 2Hp)
    gates = jnp.dot(xh, w_xh_ref[...], preferred_element_type=f32) + b_ref[...]
    Hp = h0.shape[-1]                                                 # multiple of 128
    i_g = jax.nn.sigmoid(gates[:, 0:Hp])
    f_g = jax.nn.sigmoid(gates[:, Hp:2 * Hp])
    g_g = jnp.tanh(gates[:, 2 * Hp:3 * Hp])
    o_g = jax.nn.sigmoid(gates[:, 3 * Hp:4 * Hp])
    c1 = f_g * c0 + i_g * g_g
    h1 = o_g * jnp.tanh(c1)
    h1_ref[...] = h1
    c1_ref[...] = c1


def fc_out_kernel(h1_ref, w_fc_ref, b_fc_ref, logits_ref):
    """One lane-dense vocab tile of fc_out per grid step (streamed bf16 weights)."""
    logits_ref[...] = (
        jnp.dot(h1_ref[...].astype(jnp.bfloat16), w_fc_ref[...],
                preferred_element_type=jnp.float32) + b_fc_ref[...])


# --------------------------------------------------------------------------- #
# Parameter packing (done ONCE at setup: pad to hardware-friendly layout,
# stack LSTM weights for the fused gate matmul, bf16 MXU weights)
# --------------------------------------------------------------------------- #
def prepare_params(params, tile_v=None):
    H = params["w_ih_t"].shape[0]
    V = params["w_fc_t"].shape[1]
    Hp = _round_up(H, 128)
    if tile_v is None:
        tile_v = _pick_tile_v(Hp, V)
    Vp = _round_up(V, tile_v)
    f32, bf16 = jnp.float32, jnp.bfloat16

    emb = jnp.zeros((V, Hp), f32).at[:, :H].set(params["embedding"].astype(f32))

    def pack_gate_w(w):                        # (H, 4H) -> (Hp, 4, Hp) f32, per-gate pad
        w4 = w.astype(f32).reshape(H, 4, H)
        return jnp.zeros((Hp, 4, Hp), f32).at[:H, :, :H].set(w4)

    # stacked [W_ih^T ; W_hh^T] -> (2Hp, 4Hp) bf16 (rows 0:Hp act on x, Hp:2Hp on h0)
    w_xh = jnp.concatenate(
        [pack_gate_w(params["w_ih_t"]), pack_gate_w(params["w_hh_t"])],
        axis=0).reshape(2 * Hp, 4 * Hp).astype(bf16)

    b_sum = (params["b_ih"] + params["b_hh"]).astype(f32).reshape(1, 4, H)
    b_gates = jnp.zeros((1, 4, Hp), f32).at[:, :, :H].set(b_sum).reshape(1, 4 * Hp)

    w_fc = jnp.zeros((Hp, Vp), f32).at[:H, :V].set(
        params["w_fc_t"].astype(f32)).astype(bf16)
    b_fc = jnp.zeros((1, Vp), f32).at[:, :V].set(params["b_fc"].astype(f32))

    return {
        "embedding": emb,
        "w_xh": w_xh,
        "b_gates": b_gates,
        "w_fc_t": w_fc,
        "b_fc": b_fc,
        "H": H, "V": V, "Hp": Hp, "Vp": Vp, "tile_v": tile_v,
    }


# --------------------------------------------------------------------------- #
# Wrapper
# --------------------------------------------------------------------------- #
def decoder_forward(packed, x_tokens, hidden, encoder_outputs):
    """x_tokens: (B,) int32; hidden = (h0, c0) each (1, B, H); encoder_outputs: (B, S, H)."""
    h0_3d, c0_3d = hidden
    B, S, H = encoder_outputs.shape
    Hp, Vp, V, tile_v = packed["Hp"], packed["Vp"], packed["V"], packed["tile_v"]
    Bp = _round_up(B, 8)
    n_tiles = Vp // tile_v
    f32, bf16 = jnp.float32, jnp.bfloat16
    vmem_cap = _vmem_capacity_bytes()

    # Activations: pad only when needed (no-op when B%8==0 and H%128==0);
    # encoder_outputs travel as bf16 (halves the enc DMA / VMEM residency).
    tok = x_tokens.astype(jnp.int32)
    if Bp != B:
        tok = jnp.pad(tok, (0, Bp - B))
    emb = jnp.take(packed["embedding"], tok, axis=0)                   # (Bp, Hp) f32
    h0 = _pad_to(h0_3d[0].astype(f32), (Bp, Hp))
    c0 = _pad_to(c0_3d[0].astype(f32), (Bp, Hp))
    enc = _pad_to(encoder_outputs.astype(bf16), (Bp, S, Hp))

    # ---- kernel 1: attention + LSTM (tiny, single grid point) ----
    a_need = (3 * Bp * Hp * 4 + Bp * S * Hp * 2          # emb/h0/c0 + enc(bf16)
              + 2 * Hp * 4 * Hp * 2 + 4 * Hp * 4         # stacked LSTM weights + bias
              + 2 * Bp * Hp * 4)                          # h1/c1 outputs
    vmem_a = int(min(vmem_cap * 0.6, max(3 * a_need, 16 * 1024 * 1024)))

    h1_p, c1_p = pl.pallas_call(
        attn_lstm_kernel,
        grid_spec=pltpu.PrefetchScalarGridSpec(
            num_scalar_prefetch=0,
            grid=(1,),
            in_specs=[
                pl.BlockSpec((Bp, Hp), lambda i: (0, 0)),            # embedded
                pl.BlockSpec((Bp, Hp), lambda i: (0, 0)),            # h0
                pl.BlockSpec((Bp, Hp), lambda i: (0, 0)),            # c0
                pl.BlockSpec((Bp, S, Hp), lambda i: (0, 0, 0)),      # encoder_outputs (bf16)
                pl.BlockSpec((2 * Hp, 4 * Hp), lambda i: (0, 0)),    # stacked [W_ih;W_hh]^T bf16
                pl.BlockSpec((1, 4 * Hp), lambda i: (0, 0)),         # b_ih + b_hh
            ],
            out_specs=[
                pl.BlockSpec((Bp, Hp), lambda i: (0, 0)),            # h1
                pl.BlockSpec((Bp, Hp), lambda i: (0, 0)),            # c1
            ],
        ),
        out_shape=[jax.ShapeDtypeStruct((Bp, Hp), f32),
                   jax.ShapeDtypeStruct((Bp, Hp), f32)],
        compiler_params=pltpu.CompilerParams(
            dimension_semantics=("arbitrary",),
            vmem_limit_bytes=vmem_a),
    )(emb, h0, c0, enc, packed["w_xh"], packed["b_gates"])

    # ---- kernel 2: fc_out, vocab-tiled weight stream, "parallel" grid axis ----
    fc_need = (2 * Bp * Hp * 4                                        # h1 (double-buffered)
               + 2 * (Hp * tile_v * 2 + tile_v * 4 + Bp * tile_v * 4))  # streamed tiles (x2 bufs)
    vmem_fc = int(min(vmem_cap * 0.6, max(2 * fc_need, 16 * 1024 * 1024)))

    logits_p = pl.pallas_call(
        fc_out_kernel,
        grid_spec=pltpu.PrefetchScalarGridSpec(
            num_scalar_prefetch=0,
            grid=(n_tiles,),
            in_specs=[
                pl.BlockSpec((Bp, Hp), lambda j: (0, 0)),            # h1 (invariant)
                pl.BlockSpec((Hp, tile_v), lambda j: (0, j)),        # W_fc^T tile (bf16, streamed)
                pl.BlockSpec((1, tile_v), lambda j: (0, j)),         # b_fc tile
            ],
            out_specs=pl.BlockSpec((Bp, tile_v), lambda j: (0, j)),  # logits tile (lane-dense)
        ),
        out_shape=jax.ShapeDtypeStruct((Bp, Vp), f32),
        compiler_params=pltpu.CompilerParams(
            dimension_semantics=("parallel",),   # nothing revisited -> sharded across TCs on v7x
            vmem_limit_bytes=vmem_fc),
    )(h1_p, packed["w_fc_t"], packed["b_fc"])

    logits = logits_p[:B, :V]
    h1 = h1_p[:B, :H]
    c1 = c1_p[:B, :H]
    return logits, (h1[None, :, :], c1[None, :, :])


# --------------------------------------------------------------------------- #
# Pure-JAX reference (exact f32, mirrors the PyTorch module)
# --------------------------------------------------------------------------- #
def reference_forward(params, x_tokens, hidden, encoder_outputs):
    h0, c0 = hidden[0][0], hidden[1][0]
    emb = jnp.take(params["embedding"], x_tokens, axis=0)
    scores = jnp.einsum("bsh,bh->bs", encoder_outputs, h0)
    attn = jax.nn.softmax(scores, axis=1)
    context = jnp.sum(attn[:, :, None] * encoder_outputs, axis=1)
    x = emb + context
    gates = x @ params["w_ih_t"] + params["b_ih"] + h0 @ params["w_hh_t"] + params["b_hh"]
    H = h0.shape[-1]
    i_g = jax.nn.sigmoid(gates[:, 0:H])
    f_g = jax.nn.sigmoid(gates[:, H:2 * H])
    g_g = jnp.tanh(gates[:, 2 * H:3 * H])
    o_g = jax.nn.sigmoid(gates[:, 3 * H:4 * H])
    c1 = f_g * c0 + i_g * g_g
    h1 = o_g * jnp.tanh(c1)
    logits = h1 @ params["w_fc_t"] + params["b_fc"]
    return logits, (h1[None], c1[None])


def init_params(key, hidden_size, output_size):
    ks = jax.random.split(key, 7)
    H, V = hidden_size, output_size
    scale = 0.1
    return {
        "embedding": scale * jax.random.normal(ks[0], (V, H), jnp.float32),
        "w_ih_t":    scale * jax.random.normal(ks[1], (H, 4 * H), jnp.float32),
        "b_ih":      scale * jax.random.normal(ks[2], (1, 4 * H), jnp.float32),
        "w_hh_t":    scale * jax.random.normal(ks[3], (H, 4 * H), jnp.float32),
        "b_hh":      scale * jax.random.normal(ks[4], (1, 4 * H), jnp.float32),
        "w_fc_t":    scale * jax.random.normal(ks[5], (H, V), jnp.float32),
        "b_fc":      scale * jax.random.normal(ks[6], (1, V), jnp.float32),
    }


if __name__ == "__main__":
    # batch, src seq len, hidden_size, output vocab.
    B, S, H, V = 2, 8, 32, 1000

    key = jax.random.PRNGKey(0)
    kp, kx, kh, kc, ke = jax.random.split(key, 5)

    params = init_params(kp, H, V)
    x_tokens = jax.random.randint(kx, (B,), 0, V, dtype=jnp.int32)          # (B,)
    h0 = 0.1 * jax.random.normal(kh, (1, B, H), jnp.float32)                # (1, B, H)
    c0 = 0.1 * jax.random.normal(kc, (1, B, H), jnp.float32)                # (1, B, H)
    encoder_outputs = 0.1 * jax.random.normal(ke, (B, S, H), jnp.float32)   # (B, S, H)

    packed = prepare_params(params)   # tile_v picked generation-aware (here: whole vocab in 1 tile)
    logits, (h1, c1) = decoder_forward(packed, x_tokens, (h0, c0), encoder_outputs)
    jax.block_until_ready((logits, h1, c1))

    # correctness check against exact f32 pure-JAX reference
    # (tolerances relaxed for bf16 MXU operands / bf16 enc + approx softmax reciprocal)
    ref_logits, (ref_h1, ref_c1) = reference_forward(params, x_tokens, (h0, c0), encoder_outputs)
    assert jnp.allclose(logits, ref_logits, atol=2e-2), "logits mismatch"
    assert jnp.allclose(h1, ref_h1, atol=2e-2), "hidden mismatch"
    assert jnp.allclose(c1, ref_c1, atol=2e-2), "cell mismatch"

    print("KERNEL_OK")
</pallas_src>

<mosaic_0001>
module attributes {stable_mosaic.version = 11 : i64} {
  func.func @attn_lstm_kernel(%arg0: i32, %arg1: memref<8x128xf32, #tpu.memory_space<vmem>>, %arg2: memref<8x128xf32, #tpu.memory_space<vmem>>, %arg3: memref<8x128xf32, #tpu.memory_space<vmem>>, %arg4: memref<8x8x128xbf16, #tpu.memory_space<vmem>>, %arg5: memref<256x512xbf16, #tpu.memory_space<vmem>>, %arg6: memref<1x512xf32, #tpu.memory_space<vmem>>, %arg7: memref<8x128xf32, #tpu.memory_space<vmem>>, %arg8: memref<8x128xf32, #tpu.memory_space<vmem>>) attributes {dimension_semantics = [#tpu.dimension_semantics<arbitrary>], iteration_bounds = array<i64: 1>, scalar_prefetch = 0 : i64, scratch_operands = 0 : i64, tpu.core_type = #tpu.core_type<tc>, window_params = [{pipeline_mode = #tpu.pipeline_mode<synchronous>, transform_indices = @transform_0, window_bounds = array<i64: 8, 128>}, {pipeline_mode = #tpu.pipeline_mode<synchronous>, transform_indices = @transform_1, window_bounds = array<i64: 8, 128>}, {pipeline_mode = #tpu.pipeline_mode<synchronous>, transform_indices = @transform_2, window_bounds = array<i64: 8, 128>}, {pipeline_mode = #tpu.pipeline_mode<synchronous>, transform_indices = @transform_3, window_bounds = array<i64: 8, 8, 128>}, {pipeline_mode = #tpu.pipeline_mode<synchronous>, transform_indices = @transform_4, window_bounds = array<i64: 256, 512>}, {pipeline_mode = #tpu.pipeline_mode<synchronous>, transform_indices = @transform_5, window_bounds = array<i64: 1, 512>}, {pipeline_mode = #tpu.pipeline_mode<synchronous>, transform_indices = @transform_6, window_bounds = array<i64: 8, 128>}, {pipeline_mode = #tpu.pipeline_mode<synchronous>, transform_indices = @transform_7, window_bounds = array<i64: 8, 128>}]} {
    %c0 = arith.constant 0 : index
    %c0_0 = arith.constant 0 : index
    %0 = vector.load %arg1[%c0, %c0_0] : memref<8x128xf32, #tpu.memory_space<vmem>>, vector<8x128xf32>
    %c0_1 = arith.constant 0 : index
    %c0_2 = arith.constant 0 : index
    %1 = vector.load %arg2[%c0_1, %c0_2] : memref<8x128xf32, #tpu.memory_space<vmem>>, vector<8x128xf32>
    %c0_3 = arith.constant 0 : index
    %c0_4 = arith.constant 0 : index
    %2 = vector.load %arg3[%c0_3, %c0_4] : memref<8x128xf32, #tpu.memory_space<vmem>>, vector<8x128xf32>
    %c0_5 = arith.constant 0 : index
    %c0_6 = arith.constant 0 : index
    %c0_7 = arith.constant 0 : index
    %3 = vector.load %arg4[%c0_5, %c0_6, %c0_7] : memref<8x8x128xbf16, #tpu.memory_space<vmem>>, vector<8x8x128xbf16>
    %4 = vector.shape_cast %1 : vector<8x128xf32> to vector<8x1x128xf32>
    %5 = arith.truncf %4 : vector<8x1x128xf32> to vector<8x1x128xbf16>
    "tpu.trace_start"() <{level = 10 : i32, message = "bqh,bsh->bqs"}> : () -> ()
    %cst = arith.constant dense<0.000000e+00> : vector<8x1x8xf32>
    %6 = tpu.matmul %5, %3, %cst {dimension_numbers = #tpu.dot_dimension_numbers<[2], [2], [1], [1], [0, 0, 0, 1, 1, 1], [0], [0]>} : vector<8x1x128xbf16>, vector<8x8x128xbf16>, vector<8x1x8xf32> -> vector<8x1x8xf32>
    "tpu.trace_stop"() : () -> ()
    %cst_8 = arith.constant dense<0xFF800000> : vector<8x1xf32>
    %7 = vector.multi_reduction <maximumf>, %6, %cst_8 [2] : vector<8x1x8xf32> to vector<8x1xf32>
    %8 = vector.shape_cast %7 : vector<8x1xf32> to vector<8x1x1xf32>
    %9 = vector.broadcast %8 : vector<8x1x1xf32> to vector<8x1x8xf32>
    %10 = arith.subf %6, %9 : vector<8x1x8xf32>
    %11 = math.exp %10 : vector<8x1x8xf32>
    %cst_9 = arith.constant dense<0.000000e+00> : vector<8x1xf32>
    %12 = vector.multi_reduction <add>, %11, %cst_9 [2] : vector<8x1x8xf32> to vector<8x1xf32>
    %13 = vector.shape_cast %12 : vector<8x1xf32> to vector<8x1x1xf32>
    %14 = tpu.reciprocal %13 {approx = true} : vector<8x1x1xf32> -> vector<8x1x1xf32>
    %15 = vector.broadcast %14 : vector<8x1x1xf32> to vector<8x1x8xf32>
    %16 = arith.mulf %11, %15 : vector<8x1x8xf32>
    %17 = arith.truncf %16 : vector<8x1x8xf32> to vector<8x1x8xbf16>
    "tpu.trace_start"() <{level = 10 : i32, message = "bqs,bsh->bqh"}> : () -> ()
    %cst_10 = arith.constant dense<0.000000e+00> : vector<8x1x128xf32>
    %18 = tpu.matmul %17, %3, %cst_10 {dimension_numbers = #tpu.dot_dimension_numbers<[2], [1], [1], [2], [0, 0, 0, 1, 1, 2], [0], [0]>} : vector<8x1x8xbf16>, vector<8x8x128xbf16>, vector<8x1x128xf32> -> vector<8x1x128xf32>
    "tpu.trace_stop"() : () -> ()
    %19 = vector.shape_cast %18 : vector<8x1x128xf32> to vector<8x128xf32>
    %20 = arith.addf %0, %19 : vector<8x128xf32>
    %21 = arith.truncf %20 : vector<8x128xf32> to vector<8x128xbf16>
    %22 = arith.truncf %1 : vector<8x128xf32> to vector<8x128xbf16>
    %23 = tpu.concatenate %21, %22 in 1 : vector<8x128xbf16>, vector<8x128xbf16> -> vector<8x256xbf16>
    %c0_11 = arith.constant 0 : index
    %c0_12 = arith.constant 0 : index
    %24 = vector.load %arg5[%c0_11, %c0_12] : memref<256x512xbf16, #tpu.memory_space<vmem>>, vector<256x512xbf16>
    %cst_13 = arith.constant dense<0.000000e+00> : vector<8x512xf32>
    %25 = tpu.matmul %23, %24, %cst_13 {dimension_numbers = #tpu.dot_dimension_numbers<[1], [0], [0], [1], [0, 0, 1, 1], [], []>} : vector<8x256xbf16>, vector<256x512xbf16>, vector<8x512xf32> -> vector<8x512xf32>
    %c0_14 = arith.constant 0 : index
    %c0_15 = arith.constant 0 : index
    %26 = vector.load %arg6[%c0_14, %c0_15] : memref<1x512xf32, #tpu.memory_space<vmem>>, vector<1x512xf32>
    %27 = vector.broadcast %26 : vector<1x512xf32> to vector<8x512xf32>
    %28 = arith.addf %25, %27 : vector<8x512xf32>
    %29 = vector.extract_strided_slice %28 {offsets = [0, 0], sizes = [8, 128], strides = [1, 1]} : vector<8x512xf32> to vector<8x128xf32>
    %30 = arith.negf %29 : vector<8x128xf32>
    %31 = math.exp %30 : vector<8x128xf32>
    %cst_16 = arith.constant 1.000000e+00 : f32
    %32 = vector.broadcast %cst_16 : f32 to vector<8x128xf32>
    %33 = arith.addf %32, %31 : vector<8x128xf32>
    %34 = arith.divf %32, %33 : vector<8x128xf32>
    %35 = vector.extract_strided_slice %28 {offsets = [0, 128], sizes = [8, 128], strides = [1, 1]} : vector<8x512xf32> to vector<8x128xf32>
    %36 = arith.negf %35 : vector<8x128xf32>
    %37 = math.exp %36 : vector<8x128xf32>
    %cst_17 = arith.constant 1.000000e+00 : f32
    %38 = vector.broadcast %cst_17 : f32 to vector<8x128xf32>
    %39 = arith.addf %38, %37 : vector<8x128xf32>
    %40 = arith.divf %38, %39 : vector<8x128xf32>
    %41 = vector.extract_strided_slice %28 {offsets = [0, 256], sizes = [8, 128], strides = [1, 1]} : vector<8x512xf32> to vector<8x128xf32>
    %42 = math.tanh %41 : vector<8x128xf32>
    %43 = vector.extract_strided_slice %28 {offsets = [0, 384], sizes = [8, 128], strides = [1, 1]} : vector<8x512xf32> to vector<8x128xf32>
    %44 = arith.negf %43 : vector<8x128xf32>
    %45 = math.exp %44 : vector<8x128xf32>
    %cst_18 = arith.constant 1.000000e+00 : f32
    %46 = vector.broadcast %cst_18 : f32 to vector<8x128xf32>
    %47 = arith.addf %46, %45 : vector<8x128xf32>
    %48 = arith.divf %46, %47 : vector<8x128xf32>
    %49 = arith.mulf %40, %2 : vector<8x128xf32>
    %50 = arith.mulf %34, %42 : vector<8x128xf32>
    %51 = arith.addf %49, %50 : vector<8x128xf32>
    %52 = math.tanh %51 : vector<8x128xf32>
    %53 = arith.mulf %48, %52 : vector<8x128xf32>
    %c0_19 = arith.constant 0 : index
    %c0_20 = arith.constant 0 : index
    %54 = vector.load %arg7[%c0_19, %c0_20] : memref<8x128xf32, #tpu.memory_space<vmem>>, vector<8x128xf32>
    tpu.vector_store %arg7[%c0_19, %c0_20], %53 {strides = array<i32>} : memref<8x128xf32, #tpu.memory_space<vmem>>, vector<8x128xf32>,
    %c0_21 = arith.constant 0 : index
    %c0_22 = arith.constant 0 : index
    %55 = vector.load %arg8[%c0_21, %c0_22] : memref<8x128xf32, #tpu.memory_space<vmem>>, vector<8x128xf32>
    tpu.vector_store %arg8[%c0_21, %c0_22], %51 {strides = array<i32>} : memref<8x128xf32, #tpu.memory_space<vmem>>, vector<8x128xf32>,
    return
  }
  func.func @transform_0(%arg0: i32) -> (i32, i32) {
    %c0_i32 = arith.constant 0 : i32
    %c0_i32_0 = arith.constant 0 : i32
    %c0_i32_1 = arith.constant 0 : i32
    return %c0_i32, %c0_i32_0 : i32, i32
  }
  func.func @transform_1(%arg0: i32) -> (i32, i32) {
    %c0_i32 = arith.constant 0 : i32
    %c0_i32_0 = arith.constant 0 : i32
    %c0_i32_1 = arith.constant 0 : i32
    return %c0_i32, %c0_i32_0 : i32, i32
  }
  func.func @transform_2(%arg0: i32) -> (i32, i32) {
    %c0_i32 = arith.constant 0 : i32
    %c0_i32_0 = arith.constant 0 : i32
    %c0_i32_1 = arith.constant 0 : i32
    return %c0_i32, %c0_i32_0 : i32, i32
  }
  func.func @transform_3(%arg0: i32) -> (i32, i32, i32) {
    %c0_i32 = arith.constant 0 : i32
    %c0_i32_0 = arith.constant 0 : i32
    %c0_i32_1 = arith.constant 0 : i32
    %c0_i32_2 = arith.constant 0 : i32
    return %c0_i32, %c0_i32_0, %c0_i32_1 : i32, i32, i32
  }
  func.func @transform_4(%arg0: i32) -> (i32, i32) {
    %c0_i32 = arith.constant 0 : i32
    %c0_i32_0 = arith.constant 0 : i32
    %c0_i32_1 = arith.constant 0 : i32
    return %c0_i32, %c0_i32_0 : i32, i32
  }
  func.func @transform_5(%arg0: i32) -> (i32, i32) {
    %c0_i32 = arith.constant 0 : i32
    %c0_i32_0 = arith.constant 0 : i32
    %c0_i32_1 = arith.constant 0 : i32
    return %c0_i32, %c0_i32_0 : i32, i32
  }
  func.func @transform_6(%arg0: i32) -> (i32, i32) {
    %c0_i32 = arith.constant 0 : i32
    %c0_i32_0 = arith.constant 0 : i32
    %c0_i32_1 = arith.constant 0 : i32
    return %c0_i32, %c0_i32_0 : i32, i32
  }
  func.func @transform_7(%arg0: i32) -> (i32, i32) {
    %c0_i32 = arith.constant 0 : i32
    %c0_i32_0 = arith.constant 0 : i32
    %c0_i32_1 = arith.constant 0 : i32
    return %c0_i32, %c0_i32_0 : i32, i32
  }
}

</mosaic_0001>

<llo_original>
// kernel: tpu_custom_call.1
$region0: #{tpu_custom_call.1}
  #allocation0 [shape = 'u32[]', space=smem, size = 0x4, offset = 0x4, fixed_abs, tag = 'smem constant byte address 0x4 - core index']
  #allocation1 [shape = 'u32[144,128]{1,0:T(1,128)}', space=vmem, size = 0x12000, scoped, tag = 'internal scratch']
  %s0 = inlined_call_operand.hbm [shape: f32[8,128], index: 0, kind: input, shape index: {}]
  %s1 = inlined_call_operand.hbm [shape: f32[8,128], index: 1, kind: input, shape index: {}]
  %s2 = inlined_call_operand.hbm [shape: f32[8,128], index: 2, kind: input, shape index: {}]
  %s3 = inlined_call_operand.hbm [shape: bf16[8,8,128], index: 3, kind: input, shape index: {}]
  %s4 = inlined_call_operand.hbm [shape: bf16[256,512], index: 4, kind: input, shape index: {}]
  %s5 = inlined_call_operand.vmem [shape: f32[1,512], index: 5, kind: input, shape index: {}]
  %s6 = inlined_call_operand.hbm [shape: f32[8,128], index: 6, kind: output, shape index: {0}]
  %s7 = inlined_call_operand.hbm [shape: f32[8,128], index: 7, kind: output, shape index: {1}]
  %8 = xla_tuple %s6, %s7
  %s9 = sld [smem:[#allocation0]]
  $region62: #{tpu_custom_call.1} parent=0
    _
  %s11 = ssub.s32 1, %s9
  %s12 = scalar_select 0, %s11, %s9
  $region1: #{tpu_custom_call.1} parent=0
    #allocation2 [shape = 'u8[4096]{0}', space=vmem, size = 0x1000, scoped, tag = 'input window, operand 0, single buffered']
    #allocation3 [shape = 's32[1]{0}', space=sflag, size = 0x4, scoped, tag = 'scoped memory for tpu_custom_call.1']
    #allocation4 [shape = 's32[1]{0}', space=sflag, size = 0x4, scoped, tag = 'scoped memory for tpu_custom_call.1']
    #allocation5 [shape = 'u8[4096]{0}', space=vmem, size = 0x1000, scoped, tag = 'input window, operand 1, single buffered']
    #allocation6 [shape = 's32[1]{0}', space=sflag, size = 0x4, scoped, tag = 'scoped memory for tpu_custom_call.1']
    #allocation7 [shape = 'u8[4096]{0}', space=vmem, size = 0x1000, scoped, tag = 'input window, operand 2, single buffered']
    #allocation8 [shape = 'u8[16384]{0}', space=vmem, size = 0x4000, scoped, tag = 'input window, operand 3, single buffered']
    #allocation9 [shape = 's32[1]{0}', space=sflag, size = 0x4, scoped, tag = 'scoped memory for tpu_custom_call.1']
    #allocation10 [shape = 'u8[262144]{0}', space=vmem, size = 0x40000, scoped, tag = 'input window, operand 4, single buffered']
    #allocation11 [shape = 'u8[4096]{0}', space=vmem, size = 0x1000, scoped, tag = 'output window, operand 0, single buffered']
    #allocation12 [shape = 'u8[4096]{0}', space=vmem, size = 0x1000, scoped, tag = 'output window, operand 1, single buffered']
    #allocation13 [shape = 's32[1]{0}', space=sflag, size = 0x4, scoped, tag = 'scoped memory for tpu_custom_call.1']
    %13 = vsyncpa [#allocation3], 0
    %14 = vsyncpa [#allocation6], 0
    %15 = vsyncpa [#allocation9], 0
    %16 = vsyncpa [#allocation4], 0
    %17 = vsyncpa [#allocation13], 0
    // Predicated region
    $region2: #{tpu_custom_call.1} parent=1 // pred_check
      _
    $region3: #{tpu_custom_call.1} parent=1 // pred_check_branch
      %19 = sbr.rel (0) target = $region5
    $region4: #{tpu_custom_call.1} parent=1 // pred_region
      %s21 = ssub.s32 128, 128
      %22 = vsyncadd [#allocation3], %s21
      %s24 = sshll.u32 [#allocation2], 4
      %s25 = int_to_ptr.vmem [resolvable:$true] %s24
      %27 = dma.hbm_to_vmem [thread:$0]  %s0, 128, %s25, [#allocation3]
    $region5: #{tpu_custom_call.1} parent=1 // pred_fallthru
      _
    // Predicated region
    $region6: #{tpu_custom_call.1} parent=1 // pred_check
      _
    $region7: #{tpu_custom_call.1} parent=1 // pred_check_branch
      %29 = sbr.rel (0) target = $region9
    $region8: #{tpu_custom_call.1} parent=1 // pred_region
      %s31 = ssub.s32 128, 128
      %32 = vsyncadd [#allocation6], %s31
      %s34 = sshll.u32 [#allocation5], 4
      %s35 = int_to_ptr.vmem [resolvable:$true] %s34
      %37 = dma.hbm_to_vmem [thread:$0]  %s1, 128, %s35, [#allocation6]
    $region9: #{tpu_custom_call.1} parent=1 // pred_fallthru
      _
    // Predicated region
    $region10: #{tpu_custom_call.1} parent=1 // pred_check
      _
    $region11: #{tpu_custom_call.1} parent=1 // pred_check_branch
      %39 = sbr.rel (0) target = $region13
    $region12: #{tpu_custom_call.1} parent=1 // pred_region
      %s41 = ssub.s32 128, 128
      %42 = vsyncadd [#allocation6], %s41
      %s44 = sshll.u32 [#allocation7], 4
      %s45 = int_to_ptr.vmem [resolvable:$true] %s44
      %47 = dma.hbm_to_vmem [thread:$0]  %s2, 128, %s45, [#allocation6]
    $region13: #{tpu_custom_call.1} parent=1 // pred_fallthru
      _
    // Predicated region
    $region14: #{tpu_custom_call.1} parent=1 // pred_check
      _
    $region15: #{tpu_custom_call.1} parent=1 // pred_check_branch
      %49 = sbr.rel (0) target = $region17
    $region16: #{tpu_custom_call.1} parent=1 // pred_region
      %s51 = ssub.s32 512, 512
      %52 = vsyncadd [#allocation9], %s51
      %s53 = sshll.u32 [#allocation8], 4
      %s54 = int_to_ptr.vmem [resolvable:$true] %s53
      %59 = dma.hbm_to_vmem [thread:$0]  %s3, 512, %s54, [#allocation9], 64, 64, 4
    $region17: #{tpu_custom_call.1} parent=1 // pred_fallthru
      _
    // Predicated region
    $region18: #{tpu_custom_call.1} parent=1 // pred_check
      _
    $region19: #{tpu_custom_call.1} parent=1 // pred_check_branch
      %61 = sbr.rel (0) target = $region21
    $region20: #{tpu_custom_call.1} parent=1 // pred_region
      %s63 = ssub.s32 8192, 8192
      %64 = vsyncadd [#allocation9], %s63
      %s65 = sshll.u32 [#allocation10], 4
      %s66 = int_to_ptr.vmem [resolvable:$true] %s65
      %71 = dma.hbm_to_vmem [thread:$0]  %s4, 8192, %s66, [#allocation9], 256, 256, 16
    $region21: #{tpu_custom_call.1} parent=1 // pred_fallthru
      _
    // Predicated region
    $region22: #{tpu_custom_call.1} parent=1 // pred_check
      _
    $region23: #{tpu_custom_call.1} parent=1 // pred_check_branch
      %73 = sbr.rel (0) target = $region25
    $region24: #{tpu_custom_call.1} parent=1 // pred_region
      _
    $region25: #{tpu_custom_call.1} parent=1 // pred_fallthru
      _
    // Predicated region
    $region26: #{tpu_custom_call.1} parent=1 // pred_check
      _
    $region27: #{tpu_custom_call.1} parent=1 // pred_check_branch
      %75 = sbr.rel (0) target = $region29
    $region28: #{tpu_custom_call.1} parent=1 // pred_region
      %76 = dma.done [#allocation3], 128
    $region29: #{tpu_custom_call.1} parent=1 // pred_fallthru
      _
    // Predicated region
    $region30: #{tpu_custom_call.1} parent=1 // pred_check
      _
    $region31: #{tpu_custom_call.1} parent=1 // pred_check_branch
      %78 = sbr.rel (0) target = $region33
    $region32: #{tpu_custom_call.1} parent=1 // pred_region
      %79 = dma.done [#allocation6], 128
    $region33: #{tpu_custom_call.1} parent=1 // pred_fallthru
      _
    // Predicated region
    $region34: #{tpu_custom_call.1} parent=1 // pred_check
      _
    $region35: #{tpu_custom_call.1} parent=1 // pred_check_branch
      %81 = sbr.rel (0) target = $region37
    $region36: #{tpu_custom_call.1} parent=1 // pred_region
      %82 = dma.done [#allocation6], 128
    $region37: #{tpu_custom_call.1} parent=1 // pred_fallthru
      _
    // Predicated region
    $region38: #{tpu_custom_call.1} parent=1 // pred_check
      _
    $region39: #{tpu_custom_call.1} parent=1 // pred_check_branch
      %84 = sbr.rel (0) target = $region41
    $region40: #{tpu_custom_call.1} parent=1 // pred_region
      %85 = dma.done [#allocation9], 512
    $region41: #{tpu_custom_call.1} parent=1 // pred_fallthru
      _
    // Predicated region
    $region42: #{tpu_custom_call.1} parent=1 // pred_check
      _
    $region43: #{tpu_custom_call.1} parent=1 // pred_check_branch
      %87 = sbr.rel (0) target = $region45
    $region44: #{tpu_custom_call.1} parent=1 // pred_region
      %88 = dma.done [#allocation9], 8192
    $region45: #{tpu_custom_call.1} parent=1 // pred_fallthru
      _
    %v90 = vld [vmem:[#allocation2] sm:$0xff]
    %v91 = vld [vmem:[#allocation5] sm:$0xff]
    %v92 = vld [vmem:[#allocation7] sm:$0xff]
    %v93 = vld [vmem:[#allocation8] sm:$0xf]
    %v94 = vld [vmem:[#allocation8 + $0x4] sm:$0xf]
    %v95 = vld [vmem:[#allocation8 + $0x8] sm:$0xf]
    %v96 = vld [vmem:[#allocation8 + $0xc] sm:$0xf]
    %v97 = vld [vmem:[#allocation8 + $0x10] sm:$0xf]
    %v98 = vld [vmem:[#allocation8 + $0x14] sm:$0xf]
    %v99 = vld [vmem:[#allocation8 + $0x18] sm:$0xf]
    %v100 = vld [vmem:[#allocation8 + $0x1c] sm:$0xf]
    %v102 = vcombine.high %v91, %v91
    %v104 = vunpack.c.l.s4 1966171168
    %v105 = vunpack.c.0.s8 %v104
    %v106 = vlaneseq
    %v107 = vshrl.u32 %v106, 7
    %v108 = vsub.s32 %v105, %v107
    %v109 = vrot.slane %v91, %v108
    %v111 = vunpack.c.l.s4 1966171168
    %v112 = vunpack.c.0.s8 %v111
    %v113 = vlaneseq
    %v114 = vshrl.u32 %v113, 7
    %v115 = vsub.s32 %v112, %v114
    %v116 = vrot.slane %v102, %v115
    %v117 = vcombine.high %v109, %v109
    %v118 = vcombine.high %v116, %v116
    %v120 = vunpack.c.l.s4 1966171168
    %v121 = vunpack.c.0.s8 %v120
    %v122 = vlaneseq
    %v123 = vshrl.u32 %v122, 7
    %v124 = vsub.s32 %v121, %v123
    %v125 = vrot.slane %v109, %v124
    %v127 = vunpack.c.l.s4 1966171168
    %v128 = vunpack.c.0.s8 %v127
    %v129 = vlaneseq
    %v130 = vshrl.u32 %v129, 7
    %v131 = vsub.s32 %v128, %v130
    %v132 = vrot.slane %v116, %v131
    %v134 = vunpack.c.l.s4 1966171168
    %v135 = vunpack.c.0.s8 %v134
    %v136 = vlaneseq
    %v137 = vshrl.u32 %v136, 7
    %v138 = vsub.s32 %v135, %v137
    %v139 = vrot.slane %v117, %v138
    %v141 = vunpack.c.l.s4 1966171168
    %v142 = vunpack.c.0.s8 %v141
    %v143 = vlaneseq
    %v144 = vshrl.u32 %v143, 7
    %v145 = vsub.s32 %v142, %v144
    %v146 = vrot.slane %v118, %v145
    %v147 = vcombine.high %v125, %v125
    %v148 = vcombine.high %v132, %v132
    %v149 = vcombine.high %v139, %v139
    %v150 = vcombine.high %v146, %v146
    %v159 = vpack.c.bf16 %v125, %v125
    %v160 = vpack.c.bf16 %v139, %v139
    %v161 = vpack.c.bf16 %v147, %v147
    %v162 = vpack.c.bf16 %v149, %v149
    %v163 = vpack.c.bf16 %v132, %v132
    %v164 = vpack.c.bf16 %v146, %v146
    %v165 = vpack.c.bf16 %v148, %v148
    %v166 = vpack.c.bf16 %v150, %v150
    %167 = vmatprep.subr.bf16.mxu0 0
    %168 = vmatpush1.bf16.xpose.msra.mxu0 0
    %169 = vmatprep.subr.bf16.mxu0 0
    %170 = vmatpush1.bf16.xpose.msra.mxu0 0
    %171 = vmatprep.subr.bf16.mxu0 0
    %172 = vmatpush1.bf16.xpose.msra.mxu0 0
    %173 = vmatprep.subr.bf16.mxu0 0
    %174 = vmatpush1.bf16.xpose.msra.mxu0 0
    %175 = vmatprep.subr.bf16.mxu0 0
    %176 = vmatpush1.bf16.xpose.msra.mxu0 0
    %177 = vmatprep.subr.bf16.mxu0 0
    %178 = vmatpush1.bf16.xpose.msra.mxu0 0
    %179 = vmatprep.subr.bf16.mxu0 0
    %180 = vmatpush1.bf16.xpose.msra.mxu0 0
    %181 = vmatprep.subr.bf16.mxu0 0
    %182 = vmatpush1.bf16.xpose.msra.mxu0 %v93
    %183 = vmatprep.subr.bf16.mxu0 0
    %184 = vmatpush2.bf16.xpose.msra.mxu0 0
    %185 = vmatprep.subr.bf16.mxu0 0
    %186 = vmatpush2.bf16.xpose.msra.mxu0 0
    %187 = vmatprep.subr.bf16.mxu0 0
    %188 = vmatpush2.bf16.xpose.msra.mxu0 0
    %189 = vmatprep.subr.bf16.mxu0 0
    %190 = vmatpush2.bf16.xpose.msra.mxu0 0
    %191 = vmatprep.subr.bf16.mxu0 0
    %192 = vmatpush2.bf16.xpose.msra.mxu0 0
    %193 = vmatprep.subr.bf16.mxu0 0
    %194 = vmatpush2.bf16.xpose.msra.mxu0 0
    %195 = vmatprep.subr.bf16.mxu0 0
    %196 = vmatpush2.bf16.xpose.msra.mxu0 0
    %197 = vmatprep.subr.bf16.mxu0 0
    %198 = vmatpush2.bf16.xpose.msra.mxu0 0
    %199 = vmatprep.mubr.bf16.mxu0 0
    %200 = vmatmul.mubr.bf16.gmra.mxu0 %v159
    %v201 = vpop.f32.mrf.mxu0
    %v202 = vadd.f32 0.0, %v201
    %v203 = vpop.f32.mrf.mxu0
    %v204 = vpop.f32.mrf.mxu0
    %v205 = vpop.f32.mrf.mxu0
    %206 = vdwg.mxu0
    %207 = vmatprep.subr.bf16.mxu0 0
    %208 = vmatpush1.bf16.xpose.msra.mxu0 0
    %209 = vmatprep.subr.bf16.mxu0 0
    %210 = vmatpush1.bf16.xpose.msra.mxu0 0
    %211 = vmatprep.subr.bf16.mxu0 0
    %212 = vmatpush1.bf16.xpose.msra.mxu0 0
    %213 = vmatprep.subr.bf16.mxu0 0
    %214 = vmatpush1.bf16.xpose.msra.mxu0 0
    %215 = vmatprep.subr.bf16.mxu0 0
    %216 = vmatpush1.bf16.xpose.msra.mxu0 0
    %217 = vmatprep.subr.bf16.mxu0 0
    %218 = vmatpush1.bf16.xpose.msra.mxu0 0
    %219 = vmatprep.subr.bf16.mxu0 0
    %220 = vmatpush1.bf16.xpose.msra.mxu0 0
    %221 = vmatprep.subr.bf16.mxu0 0
    %222 = vmatpush1.bf16.xpose.msra.mxu0 %v94
    %223 = vmatprep.subr.bf16.mxu0 0
    %224 = vmatpush2.bf16.xpose.msra.mxu0 0
    %225 = vmatprep.subr.bf16.mxu0 0
    %226 = vmatpush2.bf16.xpose.msra.mxu0 0
    %227 = vmatprep.subr.bf16.mxu0 0
    %228 = vmatpush2.bf16.xpose.msra.mxu0 0
    %229 = vmatprep.subr.bf16.mxu0 0
    %230 = vmatpush2.bf16.xpose.msra.mxu0 0
    %231 = vmatprep.subr.bf16.mxu0 0
    %232 = vmatpush2.bf16.xpose.msra.mxu0 0
    %233 = vmatprep.subr.bf16.mxu0 0
    %234 = vmatpush2.bf16.xpose.msra.mxu0 0
    %235 = vmatprep.subr.bf16.mxu0 0
    %236 = vmatpush2.bf16.xpose.msra.mxu0 0
    %237 = vmatprep.subr.bf16.mxu0 0
    %238 = vmatpush2.bf16.xpose.msra.mxu0 0
    %239 = vmatprep.mubr.bf16.mxu0 0
    %240 = vmatmul.mubr.bf16.gmra.mxu0 %v160
    %v241 = vpop.f32.mrf.mxu0
    %v242 = vadd.f32 0.0, %v241
    %v243 = vpop.f32.mrf.mxu0
    %v244 = vpop.f32.mrf.mxu0
    %v245 = vpop.f32.mrf.mxu0
    %246 = vdwg.mxu0
    %247 = vmatprep.subr.bf16.mxu0 0
    %248 = vmatpush1.bf16.xpose.msra.mxu0 0
    %249 = vmatprep.subr.bf16.mxu0 0
    %250 = vmatpush1.bf16.xpose.msra.mxu0 0
    %251 = vmatprep.subr.bf16.mxu0 0
    %252 = vmatpush1.bf16.xpose.msra.mxu0 0
    %253 = vmatprep.subr.bf16.mxu0 0
    %254 = vmatpush1.bf16.xpose.msra.mxu0 0
    %255 = vmatprep.subr.bf16.mxu0 0
    %256 = vmatpush1.bf16.xpose.msra.mxu0 0
    %257 = vmatprep.subr.bf16.mxu0 0
    %258 = vmatpush1.bf16.xpose.msra.mxu0 0
    %259 = vmatprep.subr.bf16.mxu0 0
    %260 = vmatpush1.bf16.xpose.msra.mxu0 0
    %261 = vmatprep.subr.bf16.mxu0 0
    %262 = vmatpush1.bf16.xpose.msra.mxu0 %v95
    %263 = vmatprep.subr.bf16.mxu0 0
    %264 = vmatpush2.bf16.xpose.msra.mxu0 0
    %265 = vmatprep.subr.bf16.mxu0 0
    %266 = vmatpush2.bf16.xpose.msra.mxu0 0
    %267 = vmatprep.subr.bf16.mxu0 0
    %268 = vmatpush2.bf16.xpose.msra.mxu0 0
    %269 = vmatprep.subr.bf16.mxu0 0
    %270 = vmatpush2.bf16.xpose.msra.mxu0 0
    %271 = vmatprep.subr.bf16.mxu0 0
    %272 = vmatpush2.bf16.xpose.msra.mxu0 0
    %273 = vmatprep.subr.bf16.mxu0 0
    %274 = vmatpush2.bf16.xpose.msra.mxu0 0
    %275 = vmatprep.subr.bf16.mxu0 0
    %276 = vmatpush2.bf16.xpose.msra.mxu0 0
    %277 = vmatprep.subr.bf16.mxu0 0
    %278 = vmatpush2.bf16.xpose.msra.mxu0 0
    %279 = vmatprep.mubr.bf16.mxu0 0
    %280 = vmatmul.mubr.bf16.gmra.mxu0 %v161
    %v281 = vpop.f32.mrf.mxu0
    %v282 = vadd.f32 0.0, %v281
    %v283 = vpop.f32.mrf.mxu0
    %v284 = vpop.f32.mrf.mxu0
    %v285 = vpop.f32.mrf.mxu0
    %286 = vdwg.mxu0
    %287 = vmatprep.subr.bf16.mxu0 0
    %288 = vmatpush1.bf16.xpose.msra.mxu0 0
    %289 = vmatprep.subr.bf16.mxu0 0
    %290 = vmatpush1.bf16.xpose.msra.mxu0 0
    %291 = vmatprep.subr.bf16.mxu0 0
    %292 = vmatpush1.bf16.xpose.msra.mxu0 0
    %293 = vmatprep.subr.bf16.mxu0 0
    %294 = vmatpush1.bf16.xpose.msra.mxu0 0
    %295 = vmatprep.subr.bf16.mxu0 0
    %296 = vmatpush1.bf16.xpose.msra.mxu0 0
    %297 = vmatprep.subr.bf16.mxu0 0
    %298 = vmatpush1.bf16.xpose.msra.mxu0 0
    %299 = vmatprep.subr.bf16.mxu0 0
    %300 = vmatpush1.bf16.xpose.msra.mxu0 0
    %301 = vmatprep.subr.bf16.mxu0 0
    %302 = vmatpush1.bf16.xpose.msra.mxu0 %v96
    %303 = vmatprep.subr.bf16.mxu0 0
    %304 = vmatpush2.bf16.xpose.msra.mxu0 0
    %305 = vmatprep.subr.bf16.mxu0 0
    %306 = vmatpush2.bf16.xpose.msra.mxu0 0
    %307 = vmatprep.subr.bf16.mxu0 0
    %308 = vmatpush2.bf16.xpose.msra.mxu0 0
    %309 = vmatprep.subr.bf16.mxu0 0
    %310 = vmatpush2.bf16.xpose.msra.mxu0 0
    %311 = vmatprep.subr.bf16.mxu0 0
    %312 = vmatpush2.bf16.xpose.msra.mxu0 0
    %313 = vmatprep.subr.bf16.mxu0 0
    %314 = vmatpush2.bf16.xpose.msra.mxu0 0
    %315 = vmatprep.subr.bf16.mxu0 0
    %316 = vmatpush2.bf16.xpose.msra.mxu0 0
    %317 = vmatprep.subr.bf16.mxu0 0
    %318 = vmatpush2.bf16.xpose.msra.mxu0 0
    %319 = vmatprep.mubr.bf16.mxu0 0
    %320 = vmatmul.mubr.bf16.gmra.mxu0 %v162
    %v321 = vpop.f32.mrf.mxu0
    %v322 = vadd.f32 0.0, %v321
    %v323 = vpop.f32.mrf.mxu0
    %v324 = vpop.f32.mrf.mxu0
    %v325 = vpop.f32.mrf.mxu0
    %326 = vdwg.mxu0
    %327 = vmatprep.subr.bf16.mxu0 0
    %328 = vmatpush1.bf16.xpose.msra.mxu0 0
    %329 = vmatprep.subr.bf16.mxu0 0
    %330 = vmatpush1.bf16.xpose.msra.mxu0 0
    %331 = vmatprep.subr.bf16.mxu0 0
    %332 = vmatpush1.bf16.xpose.msra.mxu0 0
    %333 = vmatprep.subr.bf16.mxu0 0
    %334 = vmatpush1.bf16.xpose.msra.mxu0 0
    %335 = vmatprep.subr.bf16.mxu0 0
    %336 = vmatpush1.bf16.xpose.msra.mxu0 0
    %337 = vmatprep.subr.bf16.mxu0 0
    %338 = vmatpush1.bf16.xpose.msra.mxu0 0
    %339 = vmatprep.subr.bf16.mxu0 0
    %340 = vmatpush1.bf16.xpose.msra.mxu0 0
    %341 = vmatprep.subr.bf16.mxu0 0
    %342 = vmatpush1.bf16.xpose.msra.mxu0 %v97
    %343 = vmatprep.subr.bf16.mxu0 0
    %344 = vmatpush2.bf16.xpose.msra.mxu0 0
    %345 = vmatprep.subr.bf16.mxu0 0
    %346 = vmatpush2.bf16.xpose.msra.mxu0 0
    %347 = vmatprep.subr.bf16.mxu0 0
    %348 = vmatpush2.bf16.xpose.msra.mxu0 0
    %349 = vmatprep.subr.bf16.mxu0 0
    %350 = vmatpush2.bf16.xpose.msra.mxu0 0
    %351 = vmatprep.subr.bf16.mxu0 0
    %352 = vmatpush2.bf16.xpose.msra.mxu0 0
    %353 = vmatprep.subr.bf16.mxu0 0
    %354 = vmatpush2.bf16.xpose.msra.mxu0 0
    %355 = vmatprep.subr.bf16.mxu0 0
    %356 = vmatpush2.bf16.xpose.msra.mxu0 0
    %357 = vmatprep.subr.bf16.mxu0 0
    %358 = vmatpush2.bf16.xpose.msra.mxu0 0
    %359 = vmatprep.mubr.bf16.mxu0 0
    %360 = vmatmul.mubr.bf16.gmra.mxu0 %v163
    %v361 = vpop.f32.mrf.mxu0
    %v362 = vadd.f32 0.0, %v361
    %v363 = vpop.f32.mrf.mxu0
    %v364 = vpop.f32.mrf.mxu0
    %v365 = vpop.f32.mrf.mxu0
    %366 = vdwg.mxu0
    %367 = vmatprep.subr.bf16.mxu0 0
    %368 = vmatpush1.bf16.xpose.msra.mxu0 0
    %369 = vmatprep.subr.bf16.mxu0 0
    %370 = vmatpush1.bf16.xpose.msra.mxu0 0
    %371 = vmatprep.subr.bf16.mxu0 0
    %372 = vmatpush1.bf16.xpose.msra.mxu0 0
    %373 = vmatprep.subr.bf16.mxu0 0
    %374 = vmatpush1.bf16.xpose.msra.mxu0 0
    %375 = vmatprep.subr.bf16.mxu0 0
    %376 = vmatpush1.bf16.xpose.msra.mxu0 0
    %377 = vmatprep.subr.bf16.mxu0 0
    %378 = vmatpush1.bf16.xpose.msra.mxu0 0
    %379 = vmatprep.subr.bf16.mxu0 0
    %380 = vmatpush1.bf16.xpose.msra.mxu0 0
    %381 = vmatprep.subr.bf16.mxu0 0
    %382 = vmatpush1.bf16.xpose.msra.mxu0 %v98
    %383 = vmatprep.subr.bf16.mxu0 0
    %384 = vmatpush2.bf16.xpose.msra.mxu0 0
    %385 = vmatprep.subr.bf16.mxu0 0
    %386 = vmatpush2.bf16.xpose.msra.mxu0 0
    %387 = vmatprep.subr.bf16.mxu0 0
    %388 = vmatpush2.bf16.xpose.msra.mxu0 0
    %389 = vmatprep.subr.bf16.mxu0 0
    %390 = vmatpush2.bf16.xpose.msra.mxu0 0
    %391 = vmatprep.subr.bf16.mxu0 0
    %392 = vmatpush2.bf16.xpose.msra.mxu0 0
    %393 = vmatprep.subr.bf16.mxu0 0
    %394 = vmatpush2.bf16.xpose.msra.mxu0 0
    %395 = vmatprep.subr.bf16.mxu0 0
    %396 = vmatpush2.bf16.xpose.msra.mxu0 0
    %397 = vmatprep.subr.bf16.mxu0 0
    %398 = vmatpush2.bf16.xpose.msra.mxu0 0
    %399 = vmatprep.mubr.bf16.mxu0 0
    %400 = vmatmul.mubr.bf16.gmra.mxu0 %v164
    %v401 = vpop.f32.mrf.mxu0
    %v402 = vadd.f32 0.0, %v401
    %v403 = vpop.f32.mrf.mxu0
    %v404 = vpop.f32.mrf.mxu0
    %v405 = vpop.f32.mrf.mxu0
    %406 = vdwg.mxu0
    %407 = vmatprep.subr.bf16.mxu0 0
    %408 = vmatpush1.bf16.xpose.msra.mxu0 0
    %409 = vmatprep.subr.bf16.mxu0 0
    %410 = vmatpush1.bf16.xpose.msra.mxu0 0
    %411 = vmatprep.subr.bf16.mxu0 0
    %412 = vmatpush1.bf16.xpose.msra.mxu0 0
    %413 = vmatprep.subr.bf16.mxu0 0
    %414 = vmatpush1.bf16.xpose.msra.mxu0 0
    %415 = vmatprep.subr.bf16.mxu0 0
    %416 = vmatpush1.bf16.xpose.msra.mxu0 0
    %417 = vmatprep.subr.bf16.mxu0 0
    %418 = vmatpush1.bf16.xpose.msra.mxu0 0
    %419 = vmatprep.subr.bf16.mxu0 0
    %420 = vmatpush1.bf16.xpose.msra.mxu0 0
    %421 = vmatprep.subr.bf16.mxu0 0
    %422 = vmatpush1.bf16.xpose.msra.mxu0 %v99
    %423 = vmatprep.subr.bf16.mxu0 0
    %424 = vmatpush2.bf16.xpose.msra.mxu0 0
    %425 = vmatprep.subr.bf16.mxu0 0
    %426 = vmatpush2.bf16.xpose.msra.mxu0 0
    %427 = vmatprep.subr.bf16.mxu0 0
    %428 = vmatpush2.bf16.xpose.msra.mxu0 0
    %429 = vmatprep.subr.bf16.mxu0 0
    %430 = vmatpush2.bf16.xpose.msra.mxu0 0
    %431 = vmatprep.subr.bf16.mxu0 0
    %432 = vmatpush2.bf16.xpose.msra.mxu0 0
    %433 = vmatprep.subr.bf16.mxu0 0
    %434 = vmatpush2.bf16.xpose.msra.mxu0 0
    %435 = vmatprep.subr.bf16.mxu0 0
    %436 = vmatpush2.bf16.xpose.msra.mxu0 0
    %437 = vmatprep.subr.bf16.mxu0 0
    %438 = vmatpush2.bf16.xpose.msra.mxu0 0
    %439 = vmatprep.mubr.bf16.mxu0 0
    %440 = vmatmul.mubr.bf16.gmra.mxu0 %v165
    %v441 = vpop.f32.mrf.mxu0
    %v442 = vadd.f32 0.0, %v441
    %v443 = vpop.f32.mrf.mxu0
    %v444 = vpop.f32.mrf.mxu0
    %v445 = vpop.f32.mrf.mxu0
    %446 = vdwg.mxu0
    %447 = vmatprep.subr.bf16.mxu0 0
    %448 = vmatpush1.bf16.xpose.msra.mxu0 0
    %449 = vmatprep.subr.bf16.mxu0 0
    %450 = vmatpush1.bf16.xpose.msra.mxu0 0
    %451 = vmatprep.subr.bf16.mxu0 0
    %452 = vmatpush1.bf16.xpose.msra.mxu0 0
    %453 = vmatprep.subr.bf16.mxu0 0
    %454 = vmatpush1.bf16.xpose.msra.mxu0 0
    %455 = vmatprep.subr.bf16.mxu0 0
    %456 = vmatpush1.bf16.xpose.msra.mxu0 0
    %457 = vmatprep.subr.bf16.mxu0 0
    %458 = vmatpush1.bf16.xpose.msra.mxu0 0
    %459 = vmatprep.subr.bf16.mxu0 0
    %460 = vmatpush1.bf16.xpose.msra.mxu0 0
    %461 = vmatprep.subr.bf16.mxu0 0
    %462 = vmatpush1.bf16.xpose.msra.mxu0 %v100
    %463 = vmatprep.subr.bf16.mxu0 0
    %464 = vmatpush2.bf16.xpose.msra.mxu0 0
    %465 = vmatprep.subr.bf16.mxu0 0
    %466 = vmatpush2.bf16.xpose.msra.mxu0 0
    %467 = vmatprep.subr.bf16.mxu0 0
    %468 = vmatpush2.bf16.xpose.msra.mxu0 0
    %469 = vmatprep.subr.bf16.mxu0 0
    %470 = vmatpush2.bf16.xpose.msra.mxu0 0
    %471 = vmatprep.subr.bf16.mxu0 0
    %472 = vmatpush2.bf16.xpose.msra.mxu0 0
    %473 = vmatprep.subr.bf16.mxu0 0
    %474 = vmatpush2.bf16.xpose.msra.mxu0 0
    %475 = vmatprep.subr.bf16.mxu0 0
    %476 = vmatpush2.bf16.xpose.msra.mxu0 0
    %477 = vmatprep.subr.bf16.mxu0 0
    %478 = vmatpush2.bf16.xpose.msra.mxu0 0
    %479 = vmatprep.mubr.bf16.mxu0 0
    %480 = vmatmul.mubr.bf16.gmra.mxu0 %v166
    %v481 = vpop.f32.mrf.mxu0
    %v482 = vadd.f32 0.0, %v481
    %v483 = vpop.f32.mrf.mxu0
    %v484 = vpop.f32.mrf.mxu0
    %v485 = vpop.f32.mrf.mxu0
    %486 = vdwg.mxu0
    %vm487 = vcmask 57344
    %v488 = vsel %vm487, %v202, -inf
    %489 = vmax.xlane.f32.xlu0 %v488
    %v490 = vpop.xlane.xlu0 %489
    %v491 = vsel %vm487, %v242, -inf
    %492 = vmax.xlane.f32.xlu0 %v491
    %v493 = vpop.xlane.xlu0 %492
    %v494 = vsel %vm487, %v282, -inf
    %495 = vmax.xlane.f32.xlu0 %v494
    %v496 = vpop.xlane.xlu0 %495
    %v497 = vsel %vm487, %v322, -inf
    %498 = vmax.xlane.f32.xlu0 %v497
    %v499 = vpop.xlane.xlu0 %498
    %v500 = vsel %vm487, %v362, -inf
    %501 = vmax.xlane.f32.xlu0 %v500
    %v502 = vpop.xlane.xlu0 %501
    %v503 = vsel %vm487, %v402, -inf
    %504 = vmax.xlane.f32.xlu0 %v503
    %v505 = vpop.xlane.xlu0 %504
    %v506 = vsel %vm487, %v442, -inf
    %507 = vmax.xlane.f32.xlu0 %v506
    %v508 = vpop.xlane.xlu0 %507
    %v509 = vsel %vm487, %v482, -inf
    %510 = vmax.xlane.f32.xlu0 %v509
    %v511 = vpop.xlane.xlu0 %510
    %v512 = vsub.f32 %v202, %v490
    %v513 = vsub.f32 %v242, %v493
    %v514 = vsub.f32 %v282, %v496
    %v515 = vsub.f32 %v322, %v499
    %v516 = vsub.f32 %v362, %v502
    %v517 = vsub.f32 %v402, %v505
    %v518 = vsub.f32 %v442, %v508
    %v519 = vsub.f32 %v482, %v511
    %v520 = vmul.f32 %v512, 1.442695
    %v521 = vpow.pop %v520
    %v522 = vmul.f32 %v513, 1.442695
    %v523 = vpow.pop %v522
    %v524 = vmul.f32 %v514, 1.442695
    %v525 = vpow.pop %v524
    %v526 = vmul.f32 %v515, 1.442695
    %v527 = vpow.pop %v526
    %v528 = vmul.f32 %v516, 1.442695
    %v529 = vpow.pop %v528
    %v530 = vmul.f32 %v517, 1.442695
    %v531 = vpow.pop %v530
    %v532 = vmul.f32 %v518, 1.442695
    %v533 = vpow.pop %v532
    %v534 = vmul.f32 %v519, 1.442695
    %v535 = vpow.pop %v534
    %v536 = vsel %vm487, %v521, 0.0
    %537 = vadd.xlane.f32.xlu0 %v536
    %v538 = vpop.xlane.xlu0 %537
    %v539 = vsel %vm487, %v523, 0.0
    %540 = vadd.xlane.f32.xlu0 %v539
    %v541 = vpop.xlane.xlu0 %540
    %v542 = vsel %vm487, %v525, 0.0
    %543 = vadd.xlane.f32.xlu0 %v542
    %v544 = vpop.xlane.xlu0 %543
    %v545 = vsel %vm487, %v527, 0.0
    %546 = vadd.xlane.f32.xlu0 %v545
    %v547 = vpop.xlane.xlu0 %546
    %v548 = vsel %vm487, %v529, 0.0
    %549 = vadd.xlane.f32.xlu0 %v548
    %v550 = vpop.xlane.xlu0 %549
    %v551 = vsel %vm487, %v531, 0.0
    %552 = vadd.xlane.f32.xlu0 %v551
    %v553 = vpop.xlane.xlu0 %552
    %v554 = vsel %vm487, %v533, 0.0
    %555 = vadd.xlane.f32.xlu0 %v554
    %v556 = vpop.xlane.xlu0 %555
    %v557 = vsel %vm487, %v535, 0.0
    %558 = vadd.xlane.f32.xlu0 %v557
    %v559 = vpop.xlane.xlu0 %558
    %v560 = vrcp.pop %v538
    %v561 = vrcp.pop %v541
    %v562 = vrcp.pop %v544
    %v563 = vrcp.pop %v547
    %v564 = vrcp.pop %v550
    %v565 = vrcp.pop %v553
    %v566 = vrcp.pop %v556
    %v567 = vrcp.pop %v559
    %v568 = vmul.f32 %v521, %v560
    %v569 = vmul.f32 %v523, %v561
    %v570 = vmul.f32 %v525, %v562
    %v571 = vmul.f32 %v527, %v563
    %v572 = vmul.f32 %v529, %v564
    %v573 = vmul.f32 %v531, %v565
    %v574 = vmul.f32 %v533, %v566
    %v575 = vmul.f32 %v535, %v567
    %v576 = vpack.c.bf16 %v568, %v568
    %v577 = vpack.c.bf16 %v569, %v569
    %v578 = vpack.c.bf16 %v570, %v570
    %v579 = vpack.c.bf16 %v571, %v571
    %v580 = vpack.c.bf16 %v572, %v572
    %v581 = vpack.c.bf16 %v573, %v573
    %v582 = vpack.c.bf16 %v574, %v574
    %v583 = vpack.c.bf16 %v575, %v575
    %vm584 = vcmask 64512
    %v586 = vsel %vm584, %v576, 0
    %vm588 = vcmask 1043456
    %v590 = vsel %vm588, %v93, 0
    %592 = vmatprep.subr.bf16.mxu0 0
    %593 = vmatpush1.bf16.msra.mxu0 0
    %594 = vmatprep.subr.bf16.mxu0 0
    %595 = vmatpush1.bf16.msra.mxu0 0
    %596 = vmatprep.subr.bf16.mxu0 0
    %597 = vmatpush1.bf16.msra.mxu0 0
    %598 = vmatprep.subr.bf16.mxu0 0
    %599 = vmatpush1.bf16.msra.mxu0 0
    %600 = vmatprep.subr.bf16.mxu0 0
    %601 = vmatpush1.bf16.msra.mxu0 0
    %602 = vmatprep.subr.bf16.mxu0 0
    %603 = vmatpush1.bf16.msra.mxu0 0
    %604 = vmatprep.subr.bf16.mxu0 0
    %605 = vmatpush1.bf16.msra.mxu0 0
    %606 = vmatprep.subr.bf16.mxu0 0
    %607 = vmatpush1.bf16.msra.mxu0 %v590
    %608 = vmatprep.subr.bf16.mxu0 0
    %609 = vmatpush2.bf16.msra.mxu0 0
    %610 = vmatprep.subr.bf16.mxu0 0
    %611 = vmatpush2.bf16.msra.mxu0 0
    %612 = vmatprep.subr.bf16.mxu0 0
    %613 = vmatpush2.bf16.msra.mxu0 0
    %614 = vmatprep.subr.bf16.mxu0 0
    %615 = vmatpush2.bf16.msra.mxu0 0
    %616 = vmatprep.subr.bf16.mxu0 0
    %617 = vmatpush2.bf16.msra.mxu0 0
    %618 = vmatprep.subr.bf16.mxu0 0
    %619 = vmatpush2.bf16.msra.mxu0 0
    %620 = vmatprep.subr.bf16.mxu0 0
    %621 = vmatpush2.bf16.msra.mxu0 0
    %622 = vmatprep.subr.bf16.mxu0 0
    %623 = vmatpush2.bf16.msra.mxu0 0
    %624 = vmatprep.mubr.bf16.mxu0 0
    %625 = vmatmul.mubr.bf16.gmra.mxu0 %v586
    %v626 = vpop.f32.mrf.mxu0
    %v627 = vadd.f32 0.0, %v626
    %v628 = vpop.f32.mrf.mxu0
    %v629 = vpop.f32.mrf.mxu0
    %v630 = vpop.f32.mrf.mxu0
    %631 = vdwg.mxu0
    %v633 = vsel %vm584, %v577, 0
    %v636 = vsel %vm588, %v94, 0
    %638 = vmatprep.subr.bf16.mxu0 0
    %639 = vmatpush1.bf16.msra.mxu0 0
    %640 = vmatprep.subr.bf16.mxu0 0
    %641 = vmatpush1.bf16.msra.mxu0 0
    %642 = vmatprep.subr.bf16.mxu0 0
    %643 = vmatpush1.bf16.msra.mxu0 0
    %644 = vmatprep.subr.bf16.mxu0 0
    %645 = vmatpush1.bf16.msra.mxu0 0
    %646 = vmatprep.subr.bf16.mxu0 0
    %647 = vmatpush1.bf16.msra.mxu0 0
    %648 = vmatprep.subr.bf16.mxu0 0
    %649 = vmatpush1.bf16.msra.mxu0 0
    %650 = vmatprep.subr.bf16.mxu0 0
    %651 = vmatpush1.bf16.msra.mxu0 0
    %652 = vmatprep.subr.bf16.mxu0 0
    %653 = vmatpush1.bf16.msra.mxu0 %v636
    %654 = vmatprep.subr.bf16.mxu0 0
    %655 = vmatpush2.bf16.msra.mxu0 0
    %656 = vmatprep.subr.bf16.mxu0 0
    %657 = vmatpush2.bf16.msra.mxu0 0
    %658 = vmatprep.subr.bf16.mxu0 0
    %659 = vmatpush2.bf16.msra.mxu0 0
    %660 = vmatprep.subr.bf16.mxu0 0
    %661 = vmatpush2.bf16.msra.mxu0 0
    %662 = vmatprep.subr.bf16.mxu0 0
    %663 = vmatpush2.bf16.msra.mxu0 0
    %664 = vmatprep.subr.bf16.mxu0 0
    %665 = vmatpush2.bf16.msra.mxu0 0
    %666 = vmatprep.subr.bf16.mxu0 0
    %667 = vmatpush2.bf16.msra.mxu0 0
    %668 = vmatprep.subr.bf16.mxu0 0
    %669 = vmatpush2.bf16.msra.mxu0 0
    %670 = vmatprep.mubr.bf16.mxu0 0
    %671 = vmatmul.mubr.bf16.gmra.mxu0 %v633
    %v672 = vpop.f32.mrf.mxu0
    %v673 = vadd.f32 0.0, %v672
    %v674 = vpop.f32.mrf.mxu0
    %v675 = vpop.f32.mrf.mxu0
    %v676 = vpop.f32.mrf.mxu0
    %677 = vdwg.mxu0
    %v679 = vsel %vm584, %v578, 0
    %v682 = vsel %vm588, %v95, 0
    %684 = vmatprep.subr.bf16.mxu0 0
    %685 = vmatpush1.bf16.msra.mxu0 0
    %686 = vmatprep.subr.bf16.mxu0 0
    %687 = vmatpush1.bf16.msra.mxu0 0
    %688 = vmatprep.subr.bf16.mxu0 0
    %689 = vmatpush1.bf16.msra.mxu0 0
    %690 = vmatprep.subr.bf16.mxu0 0
    %691 = vmatpush1.bf16.msra.mxu0 0
    %692 = vmatprep.subr.bf16.mxu0 0
    %693 = vmatpush1.bf16.msra.mxu0 0
    %694 = vmatprep.subr.bf16.mxu0 0
    %695 = vmatpush1.bf16.msra.mxu0 0
    %696 = vmatprep.subr.bf16.mxu0 0
    %697 = vmatpush1.bf16.msra.mxu0 0
    %698 = vmatprep.subr.bf16.mxu0 0
    %699 = vmatpush1.bf16.msra.mxu0 %v682
    %700 = vmatprep.subr.bf16.mxu0 0
    %701 = vmatpush2.bf16.msra.mxu0 0
    %702 = vmatprep.subr.bf16.mxu0 0
    %703 = vmatpush2.bf16.msra.mxu0 0
    %704 = vmatprep.subr.bf16.mxu0 0
    %705 = vmatpush2.bf16.msra.mxu0 0
    %706 = vmatprep.subr.bf16.mxu0 0
    %707 = vmatpush2.bf16.msra.mxu0 0
    %708 = vmatprep.subr.bf16.mxu0 0
    %709 = vmatpush2.bf16.msra.mxu0 0
    %710 = vmatprep.subr.bf16.mxu0 0
    %711 = vmatpush2.bf16.msra.mxu0 0
    %712 = vmatprep.subr.bf16.mxu0 0
    %713 = vmatpush2.bf16.msra.mxu0 0
    %714 = vmatprep.subr.bf16.mxu0 0
    %715 = vmatpush2.bf16.msra.mxu0 0
    %716 = vmatprep.mubr.bf16.mxu0 0
    %717 = vmatmul.mubr.bf16.gmra.mxu0 %v679
    %v718 = vpop.f32.mrf.mxu0
    %v719 = vadd.f32 0.0, %v718
    %v720 = vpop.f32.mrf.mxu0
    %v721 = vpop.f32.mrf.mxu0
    %v722 = vpop.f32.mrf.mxu0
    %723 = vdwg.mxu0
    %v725 = vsel %vm584, %v579, 0
    %v728 = vsel %vm588, %v96, 0
    %730 = vmatprep.subr.bf16.mxu0 0
    %731 = vmatpush1.bf16.msra.mxu0 0
    %732 = vmatprep.subr.bf16.mxu0 0
    %733 = vmatpush1.bf16.msra.mxu0 0
    %734 = vmatprep.subr.bf16.mxu0 0
    %735 = vmatpush1.bf16.msra.mxu0 0
    %736 = vmatprep.subr.bf16.mxu0 0
    %737 = vmatpush1.bf16.msra.mxu0 0
    %738 = vmatprep.subr.bf16.mxu0 0
    %739 = vmatpush1.bf16.msra.mxu0 0
    %740 = vmatprep.subr.bf16.mxu0 0
    %741 = vmatpush1.bf16.msra.mxu0 0
    %742 = vmatprep.subr.bf16.mxu0 0
    %743 = vmatpush1.bf16.msra.mxu0 0
    %744 = vmatprep.subr.bf16.mxu0 0
    %745 = vmatpush1.bf16.msra.mxu0 %v728
    %746 = vmatprep.subr.bf16.mxu0 0
    %747 = vmatpush2.bf16.msra.mxu0 0
    %748 = vmatprep.subr.bf16.mxu0 0
    %749 = vmatpush2.bf16.msra.mxu0 0
    %750 = vmatprep.subr.bf16.mxu0 0
    %751 = vmatpush2.bf16.msra.mxu0 0
    %752 = vmatprep.subr.bf16.mxu0 0
    %753 = vmatpush2.bf16.msra.mxu0 0
    %754 = vmatprep.subr.bf16.mxu0 0
    %755 = vmatpush2.bf16.msra.mxu0 0
    %756 = vmatprep.subr.bf16.mxu0 0
    %757 = vmatpush2.bf16.msra.mxu0 0
    %758 = vmatprep.subr.bf16.mxu0 0
    %759 = vmatpush2.bf16.msra.mxu0 0
    %760 = vmatprep.subr.bf16.mxu0 0
    %761 = vmatpush2.bf16.msra.mxu0 0
    %762 = vmatprep.mubr.bf16.mxu0 0
    %763 = vmatmul.mubr.bf16.gmra.mxu0 %v725
    %v764 = vpop.f32.mrf.mxu0
    %v765 = vadd.f32 0.0, %v764
    %v766 = vpop.f32.mrf.mxu0
    %v767 = vpop.f32.mrf.mxu0
    %v768 = vpop.f32.mrf.mxu0
    %769 = vdwg.mxu0
    %v771 = vsel %vm584, %v580, 0
    %v774 = vsel %vm588, %v97, 0
    %776 = vmatprep.subr.bf16.mxu0 0
    %777 = vmatpush1.bf16.msra.mxu0 0
    %778 = vmatprep.subr.bf16.mxu0 0
    %779 = vmatpush1.bf16.msra.mxu0 0
    %780 = vmatprep.subr.bf16.mxu0 0
    %781 = vmatpush1.bf16.msra.mxu0 0
    %782 = vmatprep.subr.bf16.mxu0 0
    %783 = vmatpush1.bf16.msra.mxu0 0
    %784 = vmatprep.subr.bf16.mxu0 0
    %785 = vmatpush1.bf16.msra.mxu0 0
    %786 = vmatprep.subr.bf16.mxu0 0
    %787 = vmatpush1.bf16.msra.mxu0 0
    %788 = vmatprep.subr.bf16.mxu0 0
    %789 = vmatpush1.bf16.msra.mxu0 0
    %790 = vmatprep.subr.bf16.mxu0 0
    %791 = vmatpush1.bf16.msra.mxu0 %v774
    %792 = vmatprep.subr.bf16.mxu0 0
    %793 = vmatpush2.bf16.msra.mxu0 0
    %794 = vmatprep.subr.bf16.mxu0 0
    %795 = vmatpush2.bf16.msra.mxu0 0
    %796 = vmatprep.subr.bf16.mxu0 0
    %797 = vmatpush2.bf16.msra.mxu0 0
    %798 = vmatprep.subr.bf16.mxu0 0
    %799 = vmatpush2.bf16.msra.mxu0 0
    %800 = vmatprep.subr.bf16.mxu0 0
    %801 = vmatpush2.bf16.msra.mxu0 0
    %802 = vmatprep.subr.bf16.mxu0 0
    %803 = vmatpush2.bf16.msra.mxu0 0
    %804 = vmatprep.subr.bf16.mxu0 0
    %805 = vmatpush2.bf16.msra.mxu0 0
    %806 = vmatprep.subr.bf16.mxu0 0
    %807 = vmatpush2.bf16.msra.mxu0 0
    %808 = vmatprep.mubr.bf16.mxu0 0
    %809 = vmatmul.mubr.bf16.gmra.mxu0 %v771
    %v810 = vpop.f32.mrf.mxu0
    %v811 = vadd.f32 0.0, %v810
    %v812 = vpop.f32.mrf.mxu0
    %v813 = vpop.f32.mrf.mxu0
    %v814 = vpop.f32.mrf.mxu0
    %815 = vdwg.mxu0
    %v817 = vsel %vm584, %v581, 0
    %v820 = vsel %vm588, %v98, 0
    %822 = vmatprep.subr.bf16.mxu0 0
    %823 = vmatpush1.bf16.msra.mxu0 0
    %824 = vmatprep.subr.bf16.mxu0 0
    %825 = vmatpush1.bf16.msra.mxu0 0
    %826 = vmatprep.subr.bf16.mxu0 0
    %827 = vmatpush1.bf16.msra.mxu0 0
    %828 = vmatprep.subr.bf16.mxu0 0
    %829 = vmatpush1.bf16.msra.mxu0 0
    %830 = vmatprep.subr.bf16.mxu0 0
    %831 = vmatpush1.bf16.msra.mxu0 0
    %832 = vmatprep.subr.bf16.mxu0 0
    %833 = vmatpush1.bf16.msra.mxu0 0
    %834 = vmatprep.subr.bf16.mxu0 0
    %835 = vmatpush1.bf16.msra.mxu0 0
    %836 = vmatprep.subr.bf16.mxu0 0
    %837 = vmatpush1.bf16.msra.mxu0 %v820
    %838 = vmatprep.subr.bf16.mxu0 0
    %839 = vmatpush2.bf16.msra.mxu0 0
    %840 = vmatprep.subr.bf16.mxu0 0
    %841 = vmatpush2.bf16.msra.mxu0 0
    %842 = vmatprep.subr.bf16.mxu0 0
    %843 = vmatpush2.bf16.msra.mxu0 0
    %844 = vmatprep.subr.bf16.mxu0 0
    %845 = vmatpush2.bf16.msra.mxu0 0
    %846 = vmatprep.subr.bf16.mxu0 0
    %847 = vmatpush2.bf16.msra.mxu0 0
    %848 = vmatprep.subr.bf16.mxu0 0
    %849 = vmatpush2.bf16.msra.mxu0 0
    %850 = vmatprep.subr.bf16.mxu0 0
    %851 = vmatpush2.bf16.msra.mxu0 0
    %852 = vmatprep.subr.bf16.mxu0 0
    %853 = vmatpush2.bf16.msra.mxu0 0
    %854 = vmatprep.mubr.bf16.mxu0 0
    %855 = vmatmul.mubr.bf16.gmra.mxu0 %v817
    %v856 = vpop.f32.mrf.mxu0
    %v857 = vadd.f32 0.0, %v856
    %v858 = vpop.f32.mrf.mxu0
    %v859 = vpop.f32.mrf.mxu0
    %v860 = vpop.f32.mrf.mxu0
    %861 = vdwg.mxu0
    %v863 = vsel %vm584, %v582, 0
    %v866 = vsel %vm588, %v99, 0
    %868 = vmatprep.subr.bf16.mxu0 0
    %869 = vmatpush1.bf16.msra.mxu0 0
    %870 = vmatprep.subr.bf16.mxu0 0
    %871 = vmatpush1.bf16.msra.mxu0 0
    %872 = vmatprep.subr.bf16.mxu0 0
    %873 = vmatpush1.bf16.msra.mxu0 0
    %874 = vmatprep.subr.bf16.mxu0 0
    %875 = vmatpush1.bf16.msra.mxu0 0
    %876 = vmatprep.subr.bf16.mxu0 0
    %877 = vmatpush1.bf16.msra.mxu0 0
    %878 = vmatprep.subr.bf16.mxu0 0
    %879 = vmatpush1.bf16.msra.mxu0 0
    %880 = vmatprep.subr.bf16.mxu0 0
    %881 = vmatpush1.bf16.msra.mxu0 0
    %882 = vmatprep.subr.bf16.mxu0 0
    %883 = vmatpush1.bf16.msra.mxu0 %v866
    %884 = vmatprep.subr.bf16.mxu0 0
    %885 = vmatpush2.bf16.msra.mxu0 0
    %886 = vmatprep.subr.bf16.mxu0 0
    %887 = vmatpush2.bf16.msra.mxu0 0
    %888 = vmatprep.subr.bf16.mxu0 0
    %889 = vmatpush2.bf16.msra.mxu0 0
    %890 = vmatprep.subr.bf16.mxu0 0
    %891 = vmatpush2.bf16.msra.mxu0 0
    %892 = vmatprep.subr.bf16.mxu0 0
    %893 = vmatpush2.bf16.msra.mxu0 0
    %894 = vmatprep.subr.bf16.mxu0 0
    %895 = vmatpush2.bf16.msra.mxu0 0
    %896 = vmatprep.subr.bf16.mxu0 0
    %897 = vmatpush2.bf16.msra.mxu0 0
    %898 = vmatprep.subr.bf16.mxu0 0
    %899 = vmatpush2.bf16.msra.mxu0 0
    %900 = vmatprep.mubr.bf16.mxu0 0
    %901 = vmatmul.mubr.bf16.gmra.mxu0 %v863
    %v902 = vpop.f32.mrf.mxu0
    %v903 = vadd.f32 0.0, %v902
    %v904 = vpop.f32.mrf.mxu0
    %v905 = vpop.f32.mrf.mxu0
    %v906 = vpop.f32.mrf.mxu0
    %907 = vdwg.mxu0
    %v909 = vsel %vm584, %v583, 0
    %v912 = vsel %vm588, %v100, 0
    %914 = vmatprep.subr.bf16.mxu0 0
    %915 = vmatpush1.bf16.msra.mxu0 0
    %916 = vmatprep.subr.bf16.mxu0 0
    %917 = vmatpush1.bf16.msra.mxu0 0
    %918 = vmatprep.subr.bf16.mxu0 0
    %919 = vmatpush1.bf16.msra.mxu0 0
    %920 = vmatprep.subr.bf16.mxu0 0
    %921 = vmatpush1.bf16.msra.mxu0 0
    %922 = vmatprep.subr.bf16.mxu0 0
    %923 = vmatpush1.bf16.msra.mxu0 0
    %924 = vmatprep.subr.bf16.mxu0 0
    %925 = vmatpush1.bf16.msra.mxu0 0
    %926 = vmatprep.subr.bf16.mxu0 0
    %927 = vmatpush1.bf16.msra.mxu0 0
    %928 = vmatprep.subr.bf16.mxu0 0
    %929 = vmatpush1.bf16.msra.mxu0 %v912
    %930 = vmatprep.subr.bf16.mxu0 0
    %931 = vmatpush2.bf16.msra.mxu0 0
    %932 = vmatprep.subr.bf16.mxu0 0
    %933 = vmatpush2.bf16.msra.mxu0 0
    %934 = vmatprep.subr.bf16.mxu0 0
    %935 = vmatpush2.bf16.msra.mxu0 0
    %936 = vmatprep.subr.bf16.mxu0 0
    %937 = vmatpush2.bf16.msra.mxu0 0
    %938 = vmatprep.subr.bf16.mxu0 0
    %939 = vmatpush2.bf16.msra.mxu0 0
    %940 = vmatprep.subr.bf16.mxu0 0
    %941 = vmatpush2.bf16.msra.mxu0 0
    %942 = vmatprep.subr.bf16.mxu0 0
    %943 = vmatpush2.bf16.msra.mxu0 0
    %944 = vmatprep.subr.bf16.mxu0 0
    %945 = vmatpush2.bf16.msra.mxu0 0
    %946 = vmatprep.mubr.bf16.mxu0 0
    %947 = vmatmul.mubr.bf16.gmra.mxu0 %v909
    %v948 = vpop.f32.mrf.mxu0
    %v949 = vadd.f32 0.0, %v948
    %v950 = vpop.f32.mrf.mxu0
    %v951 = vpop.f32.mrf.mxu0
    %v952 = vpop.f32.mrf.mxu0
    %953 = vdwg.mxu0
    %v962 = vrot.slane %v673, 7
    %vm963 = vcmask 1041409
    %v964 = vsel %vm963, %v962, %v627
    %v965 = vrot.slane %v719, 6
    %vm966 = vcmask 1042434
    %v967 = vsel %vm966, %v965, %v964
    %v968 = vrot.slane %v765, 5
    %vm969 = vcmask 1043459
    %v970 = vsel %vm969, %v968, %v967
    %v971 = vrot.slane %v811, 4
    %vm972 = vcmask 1044484
    %v973 = vsel %vm972, %v971, %v970
    %v974 = vrot.slane %v857, 3
    %vm975 = vcmask 1045509
    %v976 = vsel %vm975, %v974, %v973
    %v977 = vrot.slane %v903, 2
    %vm978 = vcmask 1046534
    %v979 = vsel %vm978, %v977, %v976
    %v980 = vrot.slane %v949, 1
    %vm981 = vcmask 1047559
    %v982 = vsel %vm981, %v980, %v979
    %v984 = vadd.f32 %v90, %v982
    %v985 = vpack.c.bf16 %v984, %v984
    %v986 = vpack.c.bf16 %v91, %v91
    %v987 = vld [vmem:[#allocation10] sm:$0xff]
    %v988 = vld [vmem:[#allocation10 + $0x8] sm:$0xff]
    %v989 = vld [vmem:[#allocation10 + $0x10] sm:$0xff]
    %v990 = vld [vmem:[#allocation10 + $0x18] sm:$0xff]
    %v991 = vld [vmem:[#allocation10 + $0x20] sm:$0xff]
    %v992 = vld [vmem:[#allocation10 + $0x28] sm:$0xff]
    %v993 = vld [vmem:[#allocation10 + $0x30] sm:$0xff]
    %v994 = vld [vmem:[#allocation10 + $0x38] sm:$0xff]
    %v995 = vld [vmem:[#allocation10 + $0x40] sm:$0xff]
    %v996 = vld [vmem:[#allocation10 + $0x48] sm:$0xff]
    %v997 = vld [vmem:[#allocation10 + $0x50] sm:$0xff]
    %v998 = vld [vmem:[#allocation10 + $0x58] sm:$0xff]
    %v999 = vld [vmem:[#allocation10 + $0x60] sm:$0xff]
    %v1000 = vld [vmem:[#allocation10 + $0x68] sm:$0xff]
    %v1001 = vld [vmem:[#allocation10 + $0x70] sm:$0xff]
    %v1002 = vld [vmem:[#allocation10 + $0x78] sm:$0xff]
    %v1003 = vld [vmem:[#allocation10 + $0x80] sm:$0xff]
    %v1004 = vld [vmem:[#allocation10 + $0x88] sm:$0xff]
    %v1005 = vld [vmem:[#allocation10 + $0x90] sm:$0xff]
    %v1006 = vld [vmem:[#allocation10 + $0x98] sm:$0xff]
    %v1007 = vld [vmem:[#allocation10 + $0xa0] sm:$0xff]
    %v1008 = vld [vmem:[#allocation10 + $0xa8] sm:$0xff]
    %v1009 = vld [vmem:[#allocation10 + $0xb0] sm:$0xff]
    %v1010 = vld [vmem:[#allocation10 + $0xb8] sm:$0xff]
    %v1011 = vld [vmem:[#allocation10 + $0xc0] sm:$0xff]
    %v1012 = vld [vmem:[#allocation10 + $0xc8] sm:$0xff]
    %v1013 = vld [vmem:[#allocation10 + $0xd0] sm:$0xff]
    %v1014 = vld [vmem:[#allocation10 + $0xd8] sm:$0xff]
    %v1015 = vld [vmem:[#allocation10 + $0xe0] sm:$0xff]
    %v1016 = vld [vmem:[#allocation10 + $0xe8] sm:$0xff]
    %v1017 = vld [vmem:[#allocation10 + $0xf0] sm:$0xff]
    %v1018 = vld [vmem:[#allocation10 + $0xf8] sm:$0xff]
    %v1019 = vld [vmem:[#allocation10 + $0x100] sm:$0xff]
    %v1020 = vld [vmem:[#allocation10 + $0x108] sm:$0xff]
    %v1021 = vld [vmem:[#allocation10 + $0x110] sm:$0xff]
    %v1022 = vld [vmem:[#allocation10 + $0x118] sm:$0xff]
    %v1023 = vld [vmem:[#allocation10 + $0x120] sm:$0xff]
    %v1024 = vld [vmem:[#allocation10 + $0x128] sm:$0xff]
    %v1025 = vld [vmem:[#allocation10 + $0x130] sm:$0xff]
    %v1026 = vld [vmem:[#allocation10 + $0x138] sm:$0xff]
    %v1027 = vld [vmem:[#allocation10 + $0x140] sm:$0xff]
    %v1028 = vld [vmem:[#allocation10 + $0x148] sm:$0xff]
    %v1029 = vld [vmem:[#allocation10 + $0x150] sm:$0xff]
    %v1030 = vld [vmem:[#allocation10 + $0x158] sm:$0xff]
    %v1031 = vld [vmem:[#allocation10 + $0x160] sm:$0xff]
    %v1032 = vld [vmem:[#allocation10 + $0x168] sm:$0xff]
    %v1033 = vld [vmem:[#allocation10 + $0x170] sm:$0xff]
    %v1034 = vld [vmem:[#allocation10 + $0x178] sm:$0xff]
    %v1035 = vld [vmem:[#allocation10 + $0x180] sm:$0xff]
    %v1036 = vld [vmem:[#allocation10 + $0x188] sm:$0xff]
    %v1037 = vld [vmem:[#allocation10 + $0x190] sm:$0xff]
    %v1038 = vld [vmem:[#allocation10 + $0x198] sm:$0xff]
    %v1039 = vld [vmem:[#allocation10 + $0x1a0] sm:$0xff]
    %v1040 = vld [vmem:[#allocation10 + $0x1a8] sm:$0xff]
    %v1041 = vld [vmem:[#allocation10 + $0x1b0] sm:$0xff]
    %v1042 = vld [vmem:[#allocation10 + $0x1b8] sm:$0xff]
    %v1043 = vld [vmem:[#allocation10 + $0x1c0] sm:$0xff]
    %v1044 = vld [vmem:[#allocation10 + $0x1c8] sm:$0xff]
    %v1045 = vld [vmem:[#allocation10 + $0x1d0] sm:$0xff]
    %v1046 = vld [vmem:[#allocation10 + $0x1d8] sm:$0xff]
    %v1047 = vld [vmem:[#allocation10 + $0x1e0] sm:$0xff]
    %v1048 = vld [vmem:[#allocation10 + $0x1e8] sm:$0xff]
    %v1049 = vld [vmem:[#allocation10 + $0x1f0] sm:$0xff]
    %v1050 = vld [vmem:[#allocation10 + $0x1f8] sm:$0xff]
    %v1051 = vld [vmem:[%s5] sm:$0xf]
    %v1053 = vlaneseq
    %v1054 = vshrl.u32 %v1053, 7
    %v1055 = vsub.s32 0, %v1054
    %v1056 = vrot.slane %v1051, %v1055
    %v1057 = vlaneseq
    %v1058 = vshrl.u32 %v1057, 7
    %v1059 = vsub.s32 1, %v1058
    %v1060 = vrot.slane %v1051, %v1059
    %v1061 = vlaneseq
    %v1062 = vshrl.u32 %v1061, 7
    %v1063 = vsub.s32 2, %v1062
    %v1064 = vrot.slane %v1051, %v1063
    %v1065 = vlaneseq
    %v1066 = vshrl.u32 %v1065, 7
    %v1067 = vsub.s32 3, %v1066
    %v1068 = vrot.slane %v1051, %v1067
    %v1137 = vunpack.c.l.b16 %v987
    %v1138 = vunpack.c.h.b16 %v987
    %v1139 = vunpack.c.l.b16 %v988
    %v1140 = vunpack.c.h.b16 %v988
    %v1141 = vunpack.c.l.b16 %v989
    %v1142 = vunpack.c.h.b16 %v989
    %v1143 = vunpack.c.l.b16 %v990
    %v1144 = vunpack.c.h.b16 %v990
    %v1145 = vunpack.c.l.b16 %v991
    %v1146 = vunpack.c.h.b16 %v991
    %v1147 = vunpack.c.l.b16 %v992
    %v1148 = vunpack.c.h.b16 %v992
    %v1149 = vunpack.c.l.b16 %v993
    %v1150 = vunpack.c.h.b16 %v993
    %v1151 = vunpack.c.l.b16 %v994
    %v1152 = vunpack.c.h.b16 %v994
    %v1153 = vunpack.c.l.b16 %v995
    %v1154 = vunpack.c.h.b16 %v995
    %v1155 = vunpack.c.l.b16 %v996
    %v1156 = vunpack.c.h.b16 %v996
    %v1157 = vunpack.c.l.b16 %v997
    %v1158 = vunpack.c.h.b16 %v997
    %v1159 = vunpack.c.l.b16 %v998
    %v1160 = vunpack.c.h.b16 %v998
    %v1161 = vunpack.c.l.b16 %v999
    %v1162 = vunpack.c.h.b16 %v999
    %v1163 = vunpack.c.l.b16 %v1000
    %v1164 = vunpack.c.h.b16 %v1000
    %v1165 = vunpack.c.l.b16 %v1001
    %v1166 = vunpack.c.h.b16 %v1001
    %v1167 = vunpack.c.l.b16 %v1002
    %v1168 = vunpack.c.h.b16 %v1002
    %v1169 = vunpack.c.l.b16 %v1003
    %v1170 = vunpack.c.h.b16 %v1003
    %v1171 = vunpack.c.l.b16 %v1004
    %v1172 = vunpack.c.h.b16 %v1004
    %v1173 = vunpack.c.l.b16 %v1005
    %v1174 = vunpack.c.h.b16 %v1005
    %v1175 = vunpack.c.l.b16 %v1006
    %v1176 = vunpack.c.h.b16 %v1006
    %v1177 = vunpack.c.l.b16 %v1007
    %v1178 = vunpack.c.h.b16 %v1007
    %v1179 = vunpack.c.l.b16 %v1008
    %v1180 = vunpack.c.h.b16 %v1008
    %v1181 = vunpack.c.l.b16 %v1009
    %v1182 = vunpack.c.h.b16 %v1009
    %v1183 = vunpack.c.l.b16 %v1010
    %v1184 = vunpack.c.h.b16 %v1010
    %v1185 = vunpack.c.l.b16 %v1011
    %v1186 = vunpack.c.h.b16 %v1011
    %v1187 = vunpack.c.l.b16 %v1012
    %v1188 = vunpack.c.h.b16 %v1012
    %v1189 = vunpack.c.l.b16 %v1013
    %v1190 = vunpack.c.h.b16 %v1013
    %v1191 = vunpack.c.l.b16 %v1014
    %v1192 = vunpack.c.h.b16 %v1014
    %v1193 = vunpack.c.l.b16 %v1015
    %v1194 = vunpack.c.h.b16 %v1015
    %v1195 = vunpack.c.l.b16 %v1016
    %v1196 = vunpack.c.h.b16 %v1016
    %v1197 = vunpack.c.l.b16 %v1017
    %v1198 = vunpack.c.h.b16 %v1017
    %v1199 = vunpack.c.l.b16 %v1018
    %v1200 = vunpack.c.h.b16 %v1018
    %v1201 = vunpack.c.l.b16 %v1019
    %v1202 = vunpack.c.h.b16 %v1019
    %v1203 = vunpack.c.l.b16 %v1020
    %v1204 = vunpack.c.h.b16 %v1020
    %v1205 = vunpack.c.l.b16 %v1021
    %v1206 = vunpack.c.h.b16 %v1021
    %v1207 = vunpack.c.l.b16 %v1022
    %v1208 = vunpack.c.h.b16 %v1022
    %v1209 = vunpack.c.l.b16 %v1023
    %v1210 = vunpack.c.h.b16 %v1023
    %v1211 = vunpack.c.l.b16 %v1024
    %v1212 = vunpack.c.h.b16 %v1024
    %v1213 = vunpack.c.l.b16 %v1025
    %v1214 = vunpack.c.h.b16 %v1025
    %v1215 = vunpack.c.l.b16 %v1026
    %v1216 = vunpack.c.h.b16 %v1026
    %v1217 = vunpack.c.l.b16 %v1027
    %v1218 = vunpack.c.h.b16 %v1027
    %v1219 = vunpack.c.l.b16 %v1028
    %v1220 = vunpack.c.h.b16 %v1028
    %v1221 = vunpack.c.l.b16 %v1029
    %v1222 = vunpack.c.h.b16 %v1029
    %v1223 = vunpack.c.l.b16 %v1030
    %v1224 = vunpack.c.h.b16 %v1030
    %v1225 = vunpack.c.l.b16 %v1031
    %v1226 = vunpack.c.h.b16 %v1031
    %v1227 = vunpack.c.l.b16 %v1032
    %v1228 = vunpack.c.h.b16 %v1032
    %v1229 = vunpack.c.l.b16 %v1033
    %v1230 = vunpack.c.h.b16 %v1033
    %v1231 = vunpack.c.l.b16 %v1034
    %v1232 = vunpack.c.h.b16 %v1034
    %v1233 = vunpack.c.l.b16 %v1035
    %v1234 = vunpack.c.h.b16 %v1035
    %v1235 = vunpack.c.l.b16 %v1036
    %v1236 = vunpack.c.h.b16 %v1036
    %v1237 = vunpack.c.l.b16 %v1037
    %v1238 = vunpack.c.h.b16 %v1037
    %v1239 = vunpack.c.l.b16 %v1038
    %v1240 = vunpack.c.h.b16 %v1038
    %v1241 = vunpack.c.l.b16 %v1039
    %v1242 = vunpack.c.h.b16 %v1039
    %v1243 = vunpack.c.l.b16 %v1040
    %v1244 = vunpack.c.h.b16 %v1040
    %v1245 = vunpack.c.l.b16 %v1041
    %v1246 = vunpack.c.h.b16 %v1041
    %v1247 = vunpack.c.l.b16 %v1042
    %v1248 = vunpack.c.h.b16 %v1042
    %v1249 = vunpack.c.l.b16 %v1043
    %v1250 = vunpack.c.h.b16 %v1043
    %v1251 = vunpack.c.l.b16 %v1044
    %v1252 = vunpack.c.h.b16 %v1044
    %v1253 = vunpack.c.l.b16 %v1045
    %v1254 = vunpack.c.h.b16 %v1045
    %v1255 = vunpack.c.l.b16 %v1046
    %v1256 = vunpack.c.h.b16 %v1046
    %v1257 = vunpack.c.l.b16 %v1047
    %v1258 = vunpack.c.h.b16 %v1047
    %v1259 = vunpack.c.l.b16 %v1048
    %v1260 = vunpack.c.h.b16 %v1048
    %v1261 = vunpack.c.l.b16 %v1049
    %v1262 = vunpack.c.h.b16 %v1049
    %v1263 = vunpack.c.l.b16 %v1050
    %v1264 = vunpack.c.h.b16 %v1050
    %v1265 = vpack.c.b16 %v1141, %v1137
    %v1266 = vpack.c.b16 %v1142, %v1138
    %v1267 = vpack.c.b16 %v1143, %v1139
    %v1268 = vpack.c.b16 %v1144, %v1140
    %v1269 = vpack.c.b16 %v1149, %v1145
    %v1270 = vpack.c.b16 %v1150, %v1146
    %v1271 = vpack.c.b16 %v1151, %v1147
    %v1272 = vpack.c.b16 %v1152, %v1148
    %v1273 = vpack.c.b16 %v1157, %v1153
    %v1274 = vpack.c.b16 %v1158, %v1154
    %v1275 = vpack.c.b16 %v1159, %v1155
    %v1276 = vpack.c.b16 %v1160, %v1156
    %v1277 = vpack.c.b16 %v1165, %v1161
    %v1278 = vpack.c.b16 %v1166, %v1162
    %v1279 = vpack.c.b16 %v1167, %v1163
    %v1280 = vpack.c.b16 %v1168, %v1164
    %v1281 = vpack.c.b16 %v1173, %v1169
    %v1282 = vpack.c.b16 %v1174, %v1170
    %v1283 = vpack.c.b16 %v1175, %v1171
    %v1284 = vpack.c.b16 %v1176, %v1172
    %v1285 = vpack.c.b16 %v1181, %v1177
    %v1286 = vpack.c.b16 %v1182, %v1178
    %v1287 = vpack.c.b16 %v1183, %v1179
    %v1288 = vpack.c.b16 %v1184, %v1180
    %v1289 = vpack.c.b16 %v1189, %v1185
    %v1290 = vpack.c.b16 %v1190, %v1186
    %v1291 = vpack.c.b16 %v1191, %v1187
    %v1292 = vpack.c.b16 %v1192, %v1188
    %v1293 = vpack.c.b16 %v1197, %v1193
    %v1294 = vpack.c.b16 %v1198, %v1194
    %v1295 = vpack.c.b16 %v1199, %v1195
    %v1296 = vpack.c.b16 %v1200, %v1196
    %v1297 = vpack.c.b16 %v1205, %v1201
    %v1298 = vpack.c.b16 %v1206, %v1202
    %v1299 = vpack.c.b16 %v1207, %v1203
    %v1300 = vpack.c.b16 %v1208, %v1204
    %v1301 = vpack.c.b16 %v1213, %v1209
    %v1302 = vpack.c.b16 %v1214, %v1210
    %v1303 = vpack.c.b16 %v1215, %v1211
    %v1304 = vpack.c.b16 %v1216, %v1212
    %v1305 = vpack.c.b16 %v1221, %v1217
    %v1306 = vpack.c.b16 %v1222, %v1218
    %v1307 = vpack.c.b16 %v1223, %v1219
    %v1308 = vpack.c.b16 %v1224, %v1220
    %v1309 = vpack.c.b16 %v1229, %v1225
    %v1310 = vpack.c.b16 %v1230, %v1226
    %v1311 = vpack.c.b16 %v1231, %v1227
    %v1312 = vpack.c.b16 %v1232, %v1228
    %v1313 = vpack.c.b16 %v1237, %v1233
    %v1314 = vpack.c.b16 %v1238, %v1234
    %v1315 = vpack.c.b16 %v1239, %v1235
    %v1316 = vpack.c.b16 %v1240, %v1236
    %v1317 = vpack.c.b16 %v1245, %v1241
    %v1318 = vpack.c.b16 %v1246, %v1242
    %v1319 = vpack.c.b16 %v1247, %v1243
    %v1320 = vpack.c.b16 %v1248, %v1244
    %v1321 = vpack.c.b16 %v1253, %v1249
    %v1322 = vpack.c.b16 %v1254, %v1250
    %v1323 = vpack.c.b16 %v1255, %v1251
    %v1324 = vpack.c.b16 %v1256, %v1252
    %v1325 = vpack.c.b16 %v1261, %v1257
    %v1326 = vpack.c.b16 %v1262, %v1258
    %v1327 = vpack.c.b16 %v1263, %v1259
    %v1328 = vpack.c.b16 %v1264, %v1260
    %1393 = vmatprep.subr.bf16.mxu0 %v1294
    %1394 = vmatpush1.bf16.msra.mxu0 %v1293
    %1395 = vmatprep.subr.bf16.mxu0 %v1290
    %1396 = vmatpush1.bf16.msra.mxu0 %v1289
    %1397 = vmatprep.subr.bf16.mxu0 %v1286
    %1398 = vmatpush1.bf16.msra.mxu0 %v1285
    %1399 = vmatprep.subr.bf16.mxu0 %v1282
    %1400 = vmatpush1.bf16.msra.mxu0 %v1281
    %1401 = vmatprep.subr.bf16.mxu0 %v1278
    %1402 = vmatpush1.bf16.msra.mxu0 %v1277
    %1403 = vmatprep.subr.bf16.mxu0 %v1274
    %1404 = vmatpush1.bf16.msra.mxu0 %v1273
    %1405 = vmatprep.subr.bf16.mxu0 %v1270
    %1406 = vmatpush1.bf16.msra.mxu0 %v1269
    %1407 = vmatprep.subr.bf16.mxu0 %v1266
    %1408 = vmatpush1.bf16.msra.mxu0 %v1265
    %1409 = vmatprep.subr.bf16.mxu0 %v1326
    %1410 = vmatpush2.bf16.msra.mxu0 %v1325
    %1411 = vmatprep.subr.bf16.mxu0 %v1322
    %1412 = vmatpush2.bf16.msra.mxu0 %v1321
    %1413 = vmatprep.subr.bf16.mxu0 %v1318
    %1414 = vmatpush2.bf16.msra.mxu0 %v1317
    %1415 = vmatprep.subr.bf16.mxu0 %v1314
    %1416 = vmatpush2.bf16.msra.mxu0 %v1313
    %1417 = vmatprep.subr.bf16.mxu0 %v1310
    %1418 = vmatpush2.bf16.msra.mxu0 %v1309
    %1419 = vmatprep.subr.bf16.mxu0 %v1306
    %1420 = vmatpush2.bf16.msra.mxu0 %v1305
    %1421 = vmatprep.subr.bf16.mxu0 %v1302
    %1422 = vmatpush2.bf16.msra.mxu0 %v1301
    %1423 = vmatprep.subr.bf16.mxu0 %v1298
    %1424 = vmatpush2.bf16.msra.mxu0 %v1297
    %1425 = vmatprep.mubr.bf16.mxu0 %v986
    %1426 = vmatmul.mubr.bf16.gmra.mxu0 %v985
    %v1427 = vpop.f32.mrf.mxu0
    %v1428 = vadd.f32 %v1056, %v1427
    %v1429 = vpop.f32.mrf.mxu0
    %v1430 = vadd.f32 %v1060, %v1429
    %v1431 = vpop.f32.mrf.mxu0
    %v1432 = vpop.f32.mrf.mxu0
    %1433 = vdwg.mxu0
    %1434 = vmatprep.subr.bf16.mxu0 %v1296
    %1435 = vmatpush1.bf16.msra.mxu0 %v1295
    %1436 = vmatprep.subr.bf16.mxu0 %v1292
    %1437 = vmatpush1.bf16.msra.mxu0 %v1291
    %1438 = vmatprep.subr.bf16.mxu0 %v1288
    %1439 = vmatpush1.bf16.msra.mxu0 %v1287
    %1440 = vmatprep.subr.bf16.mxu0 %v1284
    %1441 = vmatpush1.bf16.msra.mxu0 %v1283
    %1442 = vmatprep.subr.bf16.mxu0 %v1280
    %1443 = vmatpush1.bf16.msra.mxu0 %v1279
    %1444 = vmatprep.subr.bf16.mxu0 %v1276
    %1445 = vmatpush1.bf16.msra.mxu0 %v1275
    %1446 = vmatprep.subr.bf16.mxu0 %v1272
    %1447 = vmatpush1.bf16.msra.mxu0 %v1271
    %1448 = vmatprep.subr.bf16.mxu0 %v1268
    %1449 = vmatpush1.bf16.msra.mxu0 %v1267
    %1450 = vmatprep.subr.bf16.mxu0 %v1328
    %1451 = vmatpush2.bf16.msra.mxu0 %v1327
    %1452 = vmatprep.subr.bf16.mxu0 %v1324
    %1453 = vmatpush2.bf16.msra.mxu0 %v1323
    %1454 = vmatprep.subr.bf16.mxu0 %v1320
    %1455 = vmatpush2.bf16.msra.mxu0 %v1319
    %1456 = vmatprep.subr.bf16.mxu0 %v1316
    %1457 = vmatpush2.bf16.msra.mxu0 %v1315
    %1458 = vmatprep.subr.bf16.mxu0 %v1312
    %1459 = vmatpush2.bf16.msra.mxu0 %v1311
    %1460 = vmatprep.subr.bf16.mxu0 %v1308
    %1461 = vmatpush2.bf16.msra.mxu0 %v1307
    %1462 = vmatprep.subr.bf16.mxu0 %v1304
    %1463 = vmatpush2.bf16.msra.mxu0 %v1303
    %1464 = vmatprep.subr.bf16.mxu0 %v1300
    %1465 = vmatpush2.bf16.msra.mxu0 %v1299
    %1466 = vmatprep.mubr.bf16.mxu0 %v986
    %1467 = vmatmul.mubr.bf16.gmra.mxu0 %v985
    %v1468 = vpop.f32.mrf.mxu0
    %v1469 = vadd.f32 %v1064, %v1468
    %v1470 = vpop.f32.mrf.mxu0
    %v1471 = vadd.f32 %v1068, %v1470
    %v1472 = vpop.f32.mrf.mxu0
    %v1473 = vpop.f32.mrf.mxu0
    %1474 = vdwg.mxu0
    %v1475 = vxor.u32 %v1428, 2147483648
    %v1476 = vmul.f32 %v1475, 1.442695
    %v1477 = vpow.pop %v1476
    %v1478 = vadd.f32 %v1477, 1.0
    %v1479 = vrcp.pop %v1478
    %v1480 = vmul.f32 1.0, %v1479
    %v1481 = vxor.u32 %v1430, 2147483648
    %v1482 = vmul.f32 %v1481, 1.442695
    %v1483 = vpow.pop %v1482
    %v1484 = vadd.f32 %v1483, 1.0
    %v1485 = vrcp.pop %v1484
    %v1486 = vmul.f32 1.0, %v1485
    %v1487 = vtanh.pop %v1469
    %v1488 = vxor.u32 %v1471, 2147483648
    %v1489 = vmul.f32 %v1488, 1.442695
    %v1490 = vpow.pop %v1489
    %v1491 = vadd.f32 %v1490, 1.0
    %v1492 = vrcp.pop %v1491
    %v1493 = vmul.f32 1.0, %v1492
    %v1494 = vmul.f32 %v1486, %v92
    %v1495 = vmul.f32 %v1480, %v1487
    %v1496 = vadd.f32 %v1494, %v1495
    %v1497 = vtanh.pop %v1496
    %v1498 = vmul.f32 %v1493, %v1497
    %1499 = vst [vmem:[#allocation11] sm:$0xff] %v1498
    %1500 = vst [vmem:[#allocation12] sm:$0xff] %v1496
    // Predicated region
    $region46: #{tpu_custom_call.1} parent=1 // pred_check
      _
    $region47: #{tpu_custom_call.1} parent=1 // pred_check_branch
      %1502 = sbr.rel (0) target = $region49
    $region48: #{tpu_custom_call.1} parent=1 // pred_region
      %s1504 = ssub.s32 128, 128
      %1505 = vsyncadd [#allocation4], %s1504
      %s1507 = sshll.u32 [#allocation11], 4
      %s1508 = int_to_ptr.vmem [resolvable:$true] %s1507
      %1510 = dma.vmem_to_hbm [thread:$0]  %s1508, 128, %s6, [#allocation4]
    $region49: #{tpu_custom_call.1} parent=1 // pred_fallthru
      _
    // Predicated region
    $region50: #{tpu_custom_call.1} parent=1 // pred_check
      _
    $region51: #{tpu_custom_call.1} parent=1 // pred_check_branch
      %1512 = sbr.rel (0) target = $region53
    $region52: #{tpu_custom_call.1} parent=1 // pred_region
      %s1514 = ssub.s32 128, 128
      %1515 = vsyncadd [#allocation13], %s1514
      %s1517 = sshll.u32 [#allocation12], 4
      %s1518 = int_to_ptr.vmem [resolvable:$true] %s1517
      %1520 = dma.vmem_to_hbm [thread:$0]  %s1518, 128, %s7, [#allocation13]
    $region53: #{tpu_custom_call.1} parent=1 // pred_fallthru
      _
    // Predicated region
    $region54: #{tpu_custom_call.1} parent=1 // pred_check
      _
    $region55: #{tpu_custom_call.1} parent=1 // pred_check_branch
      %1522 = sbr.rel (0) target = $region57
    $region56: #{tpu_custom_call.1} parent=1 // pred_region
      %1523 = dma.done [#allocation4], 128
    $region57: #{tpu_custom_call.1} parent=1 // pred_fallthru
      _
    // Predicated region
    $region58: #{tpu_custom_call.1} parent=1 // pred_check
      _
    $region59: #{tpu_custom_call.1} parent=1 // pred_check_branch
      %1525 = sbr.rel (0) target = $region61
    $region60: #{tpu_custom_call.1} parent=1 // pred_region
      %1526 = dma.done [#allocation13], 128
    $region61: #{tpu_custom_call.1} parent=1 // pred_fallthru
      _
    %1527 = vsyncpa [#allocation3], 1
    %1528 = vsyncpa [#allocation6], 1
    %1529 = vsyncpa [#allocation9], 1
    %1530 = vsyncpa [#allocation4], 1
    %1531 = vsyncpa [#allocation13], 1

</llo_original>
